<compile_context>
chip_gen: v7x
topology: tpu7x:2x2x1
jax: 0.10.0
libtpu: 0.0.40
codegen_flags: <defaults>
</compile_context>

<pallas_src>
import jax
import jax.numpy as jnp
from jax import lax
from jax.experimental import pallas as pl
from jax.experimental.pallas import tpu as pltpu

BN_EPS = 1e-5
LEAKY_SLOPE = 0.1
LANE = 128            # channel padding target (vreg lane width)
SUBLANE_PITCH = 16    # mid-scratch row-pitch alignment (bf16 packed sublane tile)


def _round_up(n, m):
    return ((n + m - 1) // m) * m


def _largest_divisor_leq(n, cap):
    for d in range(min(cap, n), 0, -1):
        if n % d == 0:
            return d
    return 1


# ---------------------------------------------------------------------------
# Fused kernel: 1x1(+BN)+LeakyReLU -> 3x3(+BN)+LeakyReLU -> residual add
# ---------------------------------------------------------------------------
def _fused_resblock_kernel(x_ref, xt_ref, xb_ref, w1_ref, b1_ref, w3_ref, b3_ref,
                           o_ref, mid_ref):
    # x_ref  : (1, TH, W, C)   current row-tile of the block input (also residual)
    # xt_ref : (1, 1,  W, C)   image row just above the tile (clamped; used iff t>0)
    # xb_ref : (1, 1,  W, C)   image row just below the tile (clamped; used iff t<last)
    # w1_ref : (C, Cm)   bf16  1x1 weight (BN folded), C/Cm lane-padded to 128
    # b1_ref : (1, Cm)   f32
    # w3_ref : (3, 3*Cm, C) bf16  3x3 weight: dy-major, dx taps stacked along K
    # b3_ref : (1, C)    f32
    # o_ref  : (1, TH, W, C)
    # mid_ref: VMEM ((TH+2)*Wp, 3*Cm) bf16 -- dx-stacked 1x1 output incl. 1-row halo,
    #          row pitch Wp padded to a sublane-tile multiple.
    _, TH, W, C = x_ref.shape
    Cm = w1_ref.shape[1]
    Wp = mid_ref.shape[0] // (TH + 2)
    t = pl.program_id(1)
    last_t = pl.num_programs(1) - 1

    w1 = w1_ref[...]
    b1 = b1_ref[...]

    def emit_mid(x_rows, rows, off):
        # 1x1 conv + bias + LeakyReLU in f32, then store the three dx-shifted
        # copies into 128-lane-aligned column groups of mid_ref.
        m = jnp.dot(x_rows.reshape(rows * W, C), w1,
                    preferred_element_type=jnp.float32) + b1
        m = jnp.where(m > 0, m, LEAKY_SLOPE * m).reshape(rows, W, Cm)
        wi = lax.broadcasted_iota(jnp.int32, (rows, W, Cm), 1)
        # value at w-1 / w+1 via XLU roll; zero at the W image boundary (padding=1)
        left = jnp.where(wi >= 1, pltpu.roll(m, 1, 1), 0.0)
        right = jnp.where(wi <= W - 2, pltpu.roll(m, W - 1, 1), 0.0)
        center = m.astype(jnp.bfloat16)
        left = left.astype(jnp.bfloat16)
        right = right.astype(jnp.bfloat16)
        if Wp > W:  # pad the row pitch up to the sublane tile (zero columns)
            pad = ((0, 0), (0, Wp - W), (0, 0))
            center = jnp.pad(center, pad)
            left = jnp.pad(left, pad)
            right = jnp.pad(right, pad)
        base = off * Wp
        n_rows = rows * Wp
        mid_ref[pl.ds(base, n_rows), pl.ds(0, Cm)] = left.reshape(n_rows, Cm)
        mid_ref[pl.ds(base, n_rows), pl.ds(Cm, Cm)] = center.reshape(n_rows, Cm)
        mid_ref[pl.ds(base, n_rows), pl.ds(2 * Cm, Cm)] = right.reshape(n_rows, Cm)

    # --- interior rows of the tile ------------------------------------------
    emit_mid(x_ref[0], TH, 1)

    # --- halo rows: computed from the neighbouring image row, or zeroed at the
    #     image boundary (realizes the 3x3 conv's padding=1 along H) ----------
    @pl.when(t > 0)
    def _():
        emit_mid(xt_ref[0], 1, 0)

    @pl.when(t == 0)
    def _():
        mid_ref[pl.ds(0, Wp), :] = jnp.zeros((Wp, 3 * Cm), jnp.bfloat16)

    @pl.when(t < last_t)
    def _():
        emit_mid(xb_ref[0], 1, TH + 1)

    @pl.when(t == last_t)
    def _():
        mid_ref[pl.ds((TH + 1) * Wp, Wp), :] = jnp.zeros((Wp, 3 * Cm), jnp.bfloat16)

    # --- 3x3 conv: 3 chained dots of K = 3*Cm (one per dy); accumulation stays
    #     in vregs/MRB -- no f32 VMEM accumulator round-trip --------------------
    TWp = TH * Wp
    acc = jnp.dot(mid_ref[pl.ds(0 * Wp, TWp), :], w3_ref[0],
                  preferred_element_type=jnp.float32)
    acc = acc + jnp.dot(mid_ref[pl.ds(1 * Wp, TWp), :], w3_ref[1],
                        preferred_element_type=jnp.float32)
    acc = acc + jnp.dot(mid_ref[pl.ds(2 * Wp, TWp), :], w3_ref[2],
                        preferred_element_type=jnp.float32)

    # --- epilogue in f32: bias, LeakyReLU, residual add (re-read from x_ref) --
    y = acc + b3_ref[...]
    y = jnp.where(y > 0, y, LEAKY_SLOPE * y)
    y = y.reshape(TH, Wp, C)
    if Wp > W:
        y = y[:, :W, :]
    y = y + x_ref[0].astype(jnp.float32)
    o_ref[0] = y.astype(o_ref.dtype)


# ---------------------------------------------------------------------------
# Tiling / VMEM budgeting helpers and the pallas_call wrapper
# ---------------------------------------------------------------------------
def _tile_vmem_bytes(tile_h, W, Wp, C, Cm):
    act = 2  # bf16 activations / weights
    tile_in = tile_h * W * C * act
    halo_in = 2 * W * C * act
    tile_out = tile_h * W * C * act
    weights = (C * Cm + 9 * Cm * C) * act + (Cm + C) * 4
    scratch = (tile_h + 2) * Wp * 3 * Cm * act
    # 2x: BlockSpec double-buffers each streamed operand
    return 2 * (tile_in + halo_in + tile_out + weights) + scratch


def _vmem_capacity_bytes():
    try:
        return int(pltpu.get_tpu_info().vmem_capacity_bytes)
    except Exception:
        return 64 * 1024 * 1024   # conservative fallback (v7x per-core VMEM)


def _choose_tile_h(N, H, W, Wp, C, Cm, ws_cap):
    # ~512 matmul rows per tile amortizes the ~0.35us/grid-step overhead while
    # the double-buffered working set stays under the per-generation budget.
    target_rows = 512
    th = _largest_divisor_leq(H, max(1, min(H, max(1, target_rows // max(W, 1)))))
    while th > 1 and _tile_vmem_bytes(th, W, Wp, C, Cm) > ws_cap:
        th = _largest_divisor_leq(H, th - 1)
    # keep >= 2 grid steps overall so both v7x TensorCores get work even at N=1
    if N * (H // th) < 2 and H >= 2:
        th = _largest_divisor_leq(H, max(1, H // 2))
    return th


def fused_resblock_step(x, w1, b1, w3_packed, b3, *, tile_h=None):
    """One residual unit, fully fused (channels already lane-padded)."""
    N, H, W, C = x.shape
    Cm = w1.shape[1]
    Wp = _round_up(W, SUBLANE_PITCH)
    vmem_cap = _vmem_capacity_bytes()
    ws_cap = (vmem_cap * 3) // 8   # ~48 MiB on v5e/v6e (128 MiB VMEM), ~24 MiB on v7x (64 MiB)
    if tile_h is None:
        tile_h = _choose_tile_h(N, H, W, Wp, C, Cm, ws_cap)
    # TODO(synk): ragged last H tile (pl.ds + row masking) so prime heights (e.g. 13)
    # don't collapse to tile_h=1; the divisor fallback below is correct but slow there.
    tile_h = _largest_divisor_leq(H, tile_h)
    num_t = H // tile_h

    need = _tile_vmem_bytes(tile_h, W, Wp, C, Cm)   # already includes double-buffering
    vmem_limit = int(min(max(need + 8 * 1024 * 1024, 32 * 1024 * 1024),
                         (vmem_cap * 3) // 4))

    flops = 2 * N * H * W * (C * Cm + 9 * Cm * C)
    bytes_accessed = (N * H * W * C * 2 * 2                        # x read + y write (bf16)
                      + N * num_t * 2 * W * C * 2                  # halo rows
                      + (C * Cm + 9 * Cm * C) * 2 + (Cm + C) * 4)  # weights / biases

    return pl.pallas_call(
        _fused_resblock_kernel,
        out_shape=jax.ShapeDtypeStruct((N, H, W, C), x.dtype),
        grid=(N, num_t),
        in_specs=[
            pl.BlockSpec((1, tile_h, W, C), lambda n, t: (n, t, 0, 0)),
            pl.BlockSpec((1, 1, W, C),
                         lambda n, t: (n, jnp.maximum(t * tile_h - 1, 0), 0, 0)),
            pl.BlockSpec((1, 1, W, C),
                         lambda n, t: (n, jnp.minimum((t + 1) * tile_h, H - 1), 0, 0)),
            pl.BlockSpec((C, Cm), lambda n, t: (0, 0)),
            pl.BlockSpec((1, Cm), lambda n, t: (0, 0)),
            pl.BlockSpec((3, 3 * Cm, C), lambda n, t: (0, 0, 0)),
            pl.BlockSpec((1, C), lambda n, t: (0, 0)),
        ],
        out_specs=pl.BlockSpec((1, tile_h, W, C), lambda n, t: (n, t, 0, 0)),
        scratch_shapes=[
            pltpu.VMEM(((tile_h + 2) * Wp, 3 * Cm), jnp.bfloat16),  # dx-stacked mid (+halo)
        ],
        compiler_params=pltpu.CompilerParams(
            dimension_semantics=("parallel", "parallel"),
            vmem_limit_bytes=vmem_limit,
        ),
        cost_estimate=pl.CostEstimate(
            flops=flops, bytes_accessed=bytes_accessed, transcendentals=0),
    )(x, x, x, w1, b1, w3_packed, b3)


# ---------------------------------------------------------------------------
# Parameter construction (deterministic, synthetic), BN folding, lane padding
# ---------------------------------------------------------------------------
def _fold_bn(w, b, gamma, beta, mean, var):
    # BN(conv(x)+b) = scale*conv(x) + (b-mean)*scale + beta, scale broadcast on Cout
    scale = gamma / jnp.sqrt(var + BN_EPS)
    return w * scale, (b - mean) * scale + beta


def make_block_params(key, ch):
    cm = ch // 2
    ks = jax.random.split(key, 12)
    # Conv_BN_LeakyReLU(ch, ch//2, ksize=1): torch weight (cm, ch, 1, 1) -> here (ch, cm)
    w1 = jax.random.normal(ks[0], (ch, cm), jnp.float32) / jnp.sqrt(ch)
    b1 = 0.1 * jax.random.normal(ks[1], (cm,), jnp.float32)
    g1 = 1.0 + 0.1 * jax.random.normal(ks[2], (cm,), jnp.float32)
    be1 = 0.1 * jax.random.normal(ks[3], (cm,), jnp.float32)
    m1 = 0.1 * jax.random.normal(ks[4], (cm,), jnp.float32)
    v1 = jnp.abs(jax.random.normal(ks[5], (cm,), jnp.float32)) + 0.5
    # Conv_BN_LeakyReLU(ch//2, ch, ksize=3, pad=1): torch weight (ch, cm, 3, 3)
    # -> here tap-major (9, cm, ch), tap k = dy*3 + dx
    w3 = jax.random.normal(ks[6], (9, cm, ch), jnp.float32) / jnp.sqrt(9 * cm)
    b3 = 0.1 * jax.random.normal(ks[7], (ch,), jnp.float32)
    g3 = 1.0 + 0.1 * jax.random.normal(ks[8], (ch,), jnp.float32)
    be3 = 0.1 * jax.random.normal(ks[9], (ch,), jnp.float32)
    m3 = 0.1 * jax.random.normal(ks[10], (ch,), jnp.float32)
    v3 = jnp.abs(jax.random.normal(ks[11], (ch,), jnp.float32)) + 0.5
    w1f, b1f = _fold_bn(w1, b1, g1, be1, m1, v1)
    w3f, b3f = _fold_bn(w3, b3, g3, be3, m3, v3)
    return (w1f, b1f, w3f, b3f)


def _pad_and_pack_params(w1, b1, w3, b3, c_pad):
    """BN-folded params -> lane-padded bf16 weights + f32 biases for the kernel."""
    c_in, cm = w1.shape
    cm_pad = _round_up(cm, LANE)
    w1p = jnp.zeros((c_pad, cm_pad), jnp.float32).at[:c_in, :cm].set(w1)
    b1p = jnp.zeros((1, cm_pad), jnp.float32).at[0, :cm].set(b1)
    # (9, cm, c) tap-major (k = dy*3 + dx) -> (3, 3*cm_pad, c_pad): dy-major,
    # dx taps stacked along K, each dx group padded to a 128-lane boundary.
    w3r = w3.reshape(3, 3, cm, c_in)
    w3p = jnp.zeros((3, 3, cm_pad, c_pad), jnp.float32).at[:, :, :cm, :c_in].set(w3r)
    w3p = w3p.reshape(3, 3 * cm_pad, c_pad)
    b3p = jnp.zeros((1, c_pad), jnp.float32).at[0, :c_in].set(b3)
    return (w1p.astype(jnp.bfloat16), b1p, w3p.astype(jnp.bfloat16), b3p)


# ---------------------------------------------------------------------------
# resblock forward (NCHW in / NCHW out, matching PyTorch)
# ---------------------------------------------------------------------------
def resblock_forward(x_nchw, params, *, tile_h=None):
    n, c0, h, w = x_nchw.shape
    c_pad = _round_up(c0, LANE)
    x = jnp.transpose(x_nchw, (0, 2, 3, 1)).astype(jnp.bfloat16)   # NCHW -> NHWC, bf16
    if c_pad > c0:
        x = jnp.pad(x, ((0, 0), (0, 0), (0, 0), (0, c_pad - c0)))  # zero channel padding
    # TODO(synk): on v6e (HBM-bound for C<=256) fuse pairs of residual units per
    # pallas_call to halve intermediate feature-map traffic.
    for (w1, b1, w3, b3) in params:
        w1p, b1p, w3p, b3p = _pad_and_pack_params(w1, b1, w3, b3, c_pad)
        x = fused_resblock_step(x, w1p, b1p, w3p, b3p, tile_h=tile_h)
    x = x[..., :c0]
    return jnp.transpose(x.astype(jnp.float32), (0, 3, 1, 2))      # NHWC -> NCHW


# Pure-JAX reference (mirrors the kernel's bf16/f32 numerics; validation only)
def _ref_forward(x_nchw, params):
    x = jnp.transpose(x_nchw, (0, 2, 3, 1)).astype(jnp.bfloat16)
    for (w1, b1, w3, b3) in params:
        w1b = w1.astype(jnp.bfloat16)
        w3b = w3.reshape(3, 3, w3.shape[1], w3.shape[2]).astype(jnp.bfloat16)  # HWIO
        m = jnp.einsum('nhwc,cd->nhwd', x, w1b,
                       preferred_element_type=jnp.float32) + b1
        m = jnp.where(m > 0, m, LEAKY_SLOPE * m).astype(jnp.bfloat16)
        y = lax.conv_general_dilated(
            m, w3b, window_strides=(1, 1), padding='SAME',
            dimension_numbers=('NHWC', 'HWIO', 'NHWC'),
            preferred_element_type=jnp.float32) + b3
        y = jnp.where(y > 0, y, LEAKY_SLOPE * y)
        x = (y + x.astype(jnp.float32)).astype(jnp.bfloat16)
    return jnp.transpose(x.astype(jnp.float32), (0, 3, 1, 2))


if __name__ == "__main__":
    key = jax.random.PRNGKey(0)
    N, ch, H, W = 2, 4, 16, 16
    nblocks = 2
    kx, kp = jax.random.split(key)
    x = jax.random.normal(kx, (N, ch, H, W), jnp.float32)
    params = [make_block_params(k, ch) for k in jax.random.split(kp, nblocks)]

    ref = jax.block_until_ready(_ref_forward(x, params))

    # tile_h=8 -> two row-tiles per image, so both the image-boundary (zero halo)
    # and interior (computed halo) code paths are exercised at this small shape.
    fwd = jax.jit(lambda xx: resblock_forward(xx, params, tile_h=8))
    out = jax.block_until_ready(fwd(x))
    assert out.shape == (N, ch, H, W)
    err = float(jnp.max(jnp.abs(out - ref)))
    assert jnp.allclose(out, ref, atol=2e-2, rtol=2e-2), \
        f"mismatch vs reference (max abs err {err})"

    # Default tile picker (single H tile per image at this size).
    fwd2 = jax.jit(lambda xx: resblock_forward(xx, params))
    out2 = jax.block_until_ready(fwd2(x))
    err2 = float(jnp.max(jnp.abs(out2 - ref)))
    assert jnp.allclose(out2, ref, atol=2e-2, rtol=2e-2), \
        f"mismatch vs reference (default tiling, max abs err {err2})"

    print("KERNEL_OK")
</pallas_src>

<mosaic_0001>
module attributes {stable_mosaic.version = 11 : i64} {
  func.func @_fused_resblock_kernel(%arg0: i32, %arg1: i32, %arg2: memref<1x8x16x128xbf16, #tpu.memory_space<vmem>>, %arg3: memref<1x1x16x128xbf16, #tpu.memory_space<vmem>>, %arg4: memref<1x1x16x128xbf16, #tpu.memory_space<vmem>>, %arg5: memref<128x128xbf16, #tpu.memory_space<vmem>>, %arg6: memref<1x128xf32, #tpu.memory_space<vmem>>, %arg7: memref<3x384x128xbf16, #tpu.memory_space<vmem>>, %arg8: memref<1x128xf32, #tpu.memory_space<vmem>>, %arg9: memref<1x8x16x128xbf16, #tpu.memory_space<vmem>>, %arg10: memref<160x384xbf16, #tpu.memory_space<vmem>>) attributes {dimension_semantics = [#tpu.dimension_semantics<parallel>, #tpu.dimension_semantics<parallel>], iteration_bounds = array<i64: 2, 2>, scalar_prefetch = 0 : i64, scratch_operands = 1 : i64, tpu.core_type = #tpu.core_type<tc>, window_params = [{transform_indices = @transform_0, window_bounds = array<i64: 1, 8, 16, 128>}, {transform_indices = @transform_1, window_bounds = array<i64: 1, 1, 16, 128>}, {transform_indices = @transform_2, window_bounds = array<i64: 1, 1, 16, 128>}, {pipeline_mode = #tpu.pipeline_mode<synchronous>, transform_indices = @transform_3, window_bounds = array<i64: 128, 128>}, {pipeline_mode = #tpu.pipeline_mode<synchronous>, transform_indices = @transform_4, window_bounds = array<i64: 1, 128>}, {pipeline_mode = #tpu.pipeline_mode<synchronous>, transform_indices = @transform_5, window_bounds = array<i64: 3, 384, 128>}, {pipeline_mode = #tpu.pipeline_mode<synchronous>, transform_indices = @transform_6, window_bounds = array<i64: 1, 128>}, {transform_indices = @transform_7, window_bounds = array<i64: 1, 8, 16, 128>}]} {
    %c0 = arith.constant 0 : index
    %c0_0 = arith.constant 0 : index
    %0 = vector.load %arg5[%c0, %c0_0] : memref<128x128xbf16, #tpu.memory_space<vmem>>, vector<128x128xbf16>
    %c0_1 = arith.constant 0 : index
    %c0_2 = arith.constant 0 : index
    %1 = vector.load %arg6[%c0_1, %c0_2] : memref<1x128xf32, #tpu.memory_space<vmem>>, vector<1x128xf32>
    %c0_3 = arith.constant 0 : index
    %c0_4 = arith.constant 0 : index
    %c0_5 = arith.constant 0 : index
    %c0_6 = arith.constant 0 : index
    %2 = vector.load %arg2[%c0_3, %c0_4, %c0_5, %c0_6] : memref<1x8x16x128xbf16, #tpu.memory_space<vmem>>, vector<1x8x16x128xbf16>
    %3 = vector.shape_cast %2 : vector<1x8x16x128xbf16> to vector<8x16x128xbf16>
    %4 = vector.shape_cast %3 : vector<8x16x128xbf16> to vector<128x128xbf16>
    %cst = arith.constant dense<0.000000e+00> : vector<128x128xf32>
    %5 = tpu.matmul %4, %0, %cst {dimension_numbers = #tpu.dot_dimension_numbers<[1], [0], [0], [1], [0, 0, 1, 1], [], []>} : vector<128x128xbf16>, vector<128x128xbf16>, vector<128x128xf32> -> vector<128x128xf32>
    %6 = vector.broadcast %1 : vector<1x128xf32> to vector<128x128xf32>
    %7 = arith.addf %5, %6 : vector<128x128xf32>
    %cst_7 = arith.constant 0.000000e+00 : f32
    %8 = vector.broadcast %cst_7 : f32 to vector<128x128xf32>
    %9 = arith.cmpf ogt, %7, %8 : vector<128x128xf32>
    %cst_8 = arith.constant 1.000000e-01 : f32
    %10 = vector.broadcast %cst_8 : f32 to vector<128x128xf32>
    %11 = arith.mulf %10, %7 : vector<128x128xf32>
    %12 = arith.select %9, %7, %11 : vector<128x128xi1>, vector<128x128xf32>
    %13 = vector.shape_cast %12 : vector<128x128xf32> to vector<8x16x128xf32>
    %14 = tpu.iota {dimensions = array<i32: 1>} : vector<8x16x128xi32>
    %c1_i32 = arith.constant 1 : i32
    %15 = vector.broadcast %c1_i32 : i32 to vector<8x16x128xi32>
    %16 = arith.cmpi sge, %14, %15 : vector<8x16x128xi32>
    %c1_i32_9 = arith.constant 1 : i32
    %17 = tpu.dynamic_rotate %13 by %c1_i32_9 dim 1 : vector<8x16x128xf32>, i32 -> vector<8x16x128xf32>
    %cst_10 = arith.constant 0.000000e+00 : f32
    %18 = vector.broadcast %cst_10 : f32 to vector<8x16x128xf32>
    %19 = arith.select %16, %17, %18 : vector<8x16x128xi1>, vector<8x16x128xf32>
    %c14_i32 = arith.constant 14 : i32
    %20 = vector.broadcast %c14_i32 : i32 to vector<8x16x128xi32>
    %21 = arith.cmpi sle, %14, %20 : vector<8x16x128xi32>
    %c15_i32 = arith.constant 15 : i32
    %22 = tpu.dynamic_rotate %13 by %c15_i32 dim 1 : vector<8x16x128xf32>, i32 -> vector<8x16x128xf32>
    %cst_11 = arith.constant 0.000000e+00 : f32
    %23 = vector.broadcast %cst_11 : f32 to vector<8x16x128xf32>
    %24 = arith.select %21, %22, %23 : vector<8x16x128xi1>, vector<8x16x128xf32>
    %25 = arith.truncf %13 : vector<8x16x128xf32> to vector<8x16x128xbf16>
    %26 = arith.truncf %19 : vector<8x16x128xf32> to vector<8x16x128xbf16>
    %27 = arith.truncf %24 : vector<8x16x128xf32> to vector<8x16x128xbf16>
    %28 = vector.shape_cast %26 : vector<8x16x128xbf16> to vector<128x128xbf16>
    %c16 = arith.constant 16 : index
    %c0_12 = arith.constant 0 : index
    %29 = vector.load %arg10[%c16, %c0_12] : memref<160x384xbf16, #tpu.memory_space<vmem>>, vector<128x128xbf16>
    tpu.vector_store %arg10[%c16, %c0_12], %28 {strides = array<i32>} : memref<160x384xbf16, #tpu.memory_space<vmem>>, vector<128x128xbf16>,
    %30 = vector.shape_cast %25 : vector<8x16x128xbf16> to vector<128x128xbf16>
    %c16_13 = arith.constant 16 : index
    %c128 = arith.constant 128 : index
    %31 = vector.load %arg10[%c16_13, %c128] : memref<160x384xbf16, #tpu.memory_space<vmem>>, vector<128x128xbf16>
    tpu.vector_store %arg10[%c16_13, %c128], %30 {strides = array<i32>} : memref<160x384xbf16, #tpu.memory_space<vmem>>, vector<128x128xbf16>,
    %32 = vector.shape_cast %27 : vector<8x16x128xbf16> to vector<128x128xbf16>
    %c16_14 = arith.constant 16 : index
    %c256 = arith.constant 256 : index
    %33 = vector.load %arg10[%c16_14, %c256] : memref<160x384xbf16, #tpu.memory_space<vmem>>, vector<128x128xbf16>
    tpu.vector_store %arg10[%c16_14, %c256], %32 {strides = array<i32>} : memref<160x384xbf16, #tpu.memory_space<vmem>>, vector<128x128xbf16>,
    %c0_i32 = arith.constant 0 : i32
    %34 = arith.cmpi sgt, %arg1, %c0_i32 : i32
    %35 = arith.extui %34 : i1 to i32
    %c0_i32_15 = arith.constant 0 : i32
    %36 = arith.cmpi ne, %35, %c0_i32_15 : i32
    scf.if %36 {
      %c0_49 = arith.constant 0 : index
      %c0_50 = arith.constant 0 : index
      %c0_51 = arith.constant 0 : index
      %c0_52 = arith.constant 0 : index
      %77 = vector.load %arg3[%c0_49, %c0_50, %c0_51, %c0_52] : memref<1x1x16x128xbf16, #tpu.memory_space<vmem>>, vector<1x1x16x128xbf16>
      %78 = vector.shape_cast %77 : vector<1x1x16x128xbf16> to vector<1x16x128xbf16>
      %79 = vector.shape_cast %78 : vector<1x16x128xbf16> to vector<16x128xbf16>
      %cst_53 = arith.constant dense<0.000000e+00> : vector<16x128xf32>
      %80 = tpu.matmul %79, %0, %cst_53 {dimension_numbers = #tpu.dot_dimension_numbers<[1], [0], [0], [1], [0, 0, 1, 1], [], []>} : vector<16x128xbf16>, vector<128x128xbf16>, vector<16x128xf32> -> vector<16x128xf32>
      %81 = vector.broadcast %1 : vector<1x128xf32> to vector<16x128xf32>
      %82 = arith.addf %80, %81 : vector<16x128xf32>
      %cst_54 = arith.constant 0.000000e+00 : f32
      %83 = vector.broadcast %cst_54 : f32 to vector<16x128xf32>
      %84 = arith.cmpf ogt, %82, %83 : vector<16x128xf32>
      %cst_55 = arith.constant 1.000000e-01 : f32
      %85 = vector.broadcast %cst_55 : f32 to vector<16x128xf32>
      %86 = arith.mulf %85, %82 : vector<16x128xf32>
      %87 = arith.select %84, %82, %86 : vector<16x128xi1>, vector<16x128xf32>
      %88 = vector.shape_cast %87 : vector<16x128xf32> to vector<1x16x128xf32>
      %89 = tpu.iota {dimensions = array<i32: 1>} : vector<1x16x128xi32>
      %c1_i32_56 = arith.constant 1 : i32
      %90 = vector.broadcast %c1_i32_56 : i32 to vector<1x16x128xi32>
      %91 = arith.cmpi sge, %89, %90 : vector<1x16x128xi32>
      %c1_i32_57 = arith.constant 1 : i32
      %92 = tpu.dynamic_rotate %88 by %c1_i32_57 dim 1 : vector<1x16x128xf32>, i32 -> vector<1x16x128xf32>
      %cst_58 = arith.constant 0.000000e+00 : f32
      %93 = vector.broadcast %cst_58 : f32 to vector<1x16x128xf32>
      %94 = arith.select %91, %92, %93 : vector<1x16x128xi1>, vector<1x16x128xf32>
      %c14_i32_59 = arith.constant 14 : i32
      %95 = vector.broadcast %c14_i32_59 : i32 to vector<1x16x128xi32>
      %96 = arith.cmpi sle, %89, %95 : vector<1x16x128xi32>
      %c15_i32_60 = arith.constant 15 : i32
      %97 = tpu.dynamic_rotate %88 by %c15_i32_60 dim 1 : vector<1x16x128xf32>, i32 -> vector<1x16x128xf32>
      %cst_61 = arith.constant 0.000000e+00 : f32
      %98 = vector.broadcast %cst_61 : f32 to vector<1x16x128xf32>
      %99 = arith.select %96, %97, %98 : vector<1x16x128xi1>, vector<1x16x128xf32>
      %100 = arith.truncf %88 : vector<1x16x128xf32> to vector<1x16x128xbf16>
      %101 = arith.truncf %94 : vector<1x16x128xf32> to vector<1x16x128xbf16>
      %102 = arith.truncf %99 : vector<1x16x128xf32> to vector<1x16x128xbf16>
      %103 = vector.shape_cast %101 : vector<1x16x128xbf16> to vector<16x128xbf16>
      %c0_62 = arith.constant 0 : index
      %c0_63 = arith.constant 0 : index
      %104 = vector.load %arg10[%c0_62, %c0_63] : memref<160x384xbf16, #tpu.memory_space<vmem>>, vector<16x128xbf16>
      tpu.vector_store %arg10[%c0_62, %c0_63], %103 {strides = array<i32>} : memref<160x384xbf16, #tpu.memory_space<vmem>>, vector<16x128xbf16>,
      %105 = vector.shape_cast %100 : vector<1x16x128xbf16> to vector<16x128xbf16>
      %c0_64 = arith.constant 0 : index
      %c128_65 = arith.constant 128 : index
      %106 = vector.load %arg10[%c0_64, %c128_65] : memref<160x384xbf16, #tpu.memory_space<vmem>>, vector<16x128xbf16>
      tpu.vector_store %arg10[%c0_64, %c128_65], %105 {strides = array<i32>} : memref<160x384xbf16, #tpu.memory_space<vmem>>, vector<16x128xbf16>,
      %107 = vector.shape_cast %102 : vector<1x16x128xbf16> to vector<16x128xbf16>
      %c0_66 = arith.constant 0 : index
      %c256_67 = arith.constant 256 : index
      %108 = vector.load %arg10[%c0_66, %c256_67] : memref<160x384xbf16, #tpu.memory_space<vmem>>, vector<16x128xbf16>
      tpu.vector_store %arg10[%c0_66, %c256_67], %107 {strides = array<i32>} : memref<160x384xbf16, #tpu.memory_space<vmem>>, vector<16x128xbf16>,
    } else {
    }
    %c0_i32_16 = arith.constant 0 : i32
    %37 = arith.cmpi eq, %arg1, %c0_i32_16 : i32
    %38 = arith.extui %37 : i1 to i32
    %c0_i32_17 = arith.constant 0 : i32
    %39 = arith.cmpi ne, %38, %c0_i32_17 : i32
    scf.if %39 {
      %cst_49 = arith.constant 0.000000e+00 : bf16
      %77 = vector.broadcast %cst_49 : bf16 to vector<16x384xbf16>
      %c0_50 = arith.constant 0 : index
      %c0_51 = arith.constant 0 : index
      %78 = vector.load %arg10[%c0_50, %c0_51] : memref<160x384xbf16, #tpu.memory_space<vmem>>, vector<16x384xbf16>
      tpu.vector_store %arg10[%c0_50, %c0_51], %77 {strides = array<i32>} : memref<160x384xbf16, #tpu.memory_space<vmem>>, vector<16x384xbf16>,
    } else {
    }
    %c1_i32_18 = arith.constant 1 : i32
    %40 = arith.cmpi slt, %arg1, %c1_i32_18 : i32
    %41 = arith.extui %40 : i1 to i32
    %c0_i32_19 = arith.constant 0 : i32
    %42 = arith.cmpi ne, %41, %c0_i32_19 : i32
    scf.if %42 {
      %c0_49 = arith.constant 0 : index
      %c0_50 = arith.constant 0 : index
      %c0_51 = arith.constant 0 : index
      %c0_52 = arith.constant 0 : index
      %77 = vector.load %arg4[%c0_49, %c0_50, %c0_51, %c0_52] : memref<1x1x16x128xbf16, #tpu.memory_space<vmem>>, vector<1x1x16x128xbf16>
      %78 = vector.shape_cast %77 : vector<1x1x16x128xbf16> to vector<1x16x128xbf16>
      %79 = vector.shape_cast %78 : vector<1x16x128xbf16> to vector<16x128xbf16>
      %cst_53 = arith.constant dense<0.000000e+00> : vector<16x128xf32>
      %80 = tpu.matmul %79, %0, %cst_53 {dimension_numbers = #tpu.dot_dimension_numbers<[1], [0], [0], [1], [0, 0, 1, 1], [], []>} : vector<16x128xbf16>, vector<128x128xbf16>, vector<16x128xf32> -> vector<16x128xf32>
      %81 = vector.broadcast %1 : vector<1x128xf32> to vector<16x128xf32>
      %82 = arith.addf %80, %81 : vector<16x128xf32>
      %cst_54 = arith.constant 0.000000e+00 : f32
      %83 = vector.broadcast %cst_54 : f32 to vector<16x128xf32>
      %84 = arith.cmpf ogt, %82, %83 : vector<16x128xf32>
      %cst_55 = arith.constant 1.000000e-01 : f32
      %85 = vector.broadcast %cst_55 : f32 to vector<16x128xf32>
      %86 = arith.mulf %85, %82 : vector<16x128xf32>
      %87 = arith.select %84, %82, %86 : vector<16x128xi1>, vector<16x128xf32>
      %88 = vector.shape_cast %87 : vector<16x128xf32> to vector<1x16x128xf32>
      %89 = tpu.iota {dimensions = array<i32: 1>} : vector<1x16x128xi32>
      %c1_i32_56 = arith.constant 1 : i32
      %90 = vector.broadcast %c1_i32_56 : i32 to vector<1x16x128xi32>
      %91 = arith.cmpi sge, %89, %90 : vector<1x16x128xi32>
      %c1_i32_57 = arith.constant 1 : i32
      %92 = tpu.dynamic_rotate %88 by %c1_i32_57 dim 1 : vector<1x16x128xf32>, i32 -> vector<1x16x128xf32>
      %cst_58 = arith.constant 0.000000e+00 : f32
      %93 = vector.broadcast %cst_58 : f32 to vector<1x16x128xf32>
      %94 = arith.select %91, %92, %93 : vector<1x16x128xi1>, vector<1x16x128xf32>
      %c14_i32_59 = arith.constant 14 : i32
      %95 = vector.broadcast %c14_i32_59 : i32 to vector<1x16x128xi32>
      %96 = arith.cmpi sle, %89, %95 : vector<1x16x128xi32>
      %c15_i32_60 = arith.constant 15 : i32
      %97 = tpu.dynamic_rotate %88 by %c15_i32_60 dim 1 : vector<1x16x128xf32>, i32 -> vector<1x16x128xf32>
      %cst_61 = arith.constant 0.000000e+00 : f32
      %98 = vector.broadcast %cst_61 : f32 to vector<1x16x128xf32>
      %99 = arith.select %96, %97, %98 : vector<1x16x128xi1>, vector<1x16x128xf32>
      %100 = arith.truncf %88 : vector<1x16x128xf32> to vector<1x16x128xbf16>
      %101 = arith.truncf %94 : vector<1x16x128xf32> to vector<1x16x128xbf16>
      %102 = arith.truncf %99 : vector<1x16x128xf32> to vector<1x16x128xbf16>
      %103 = vector.shape_cast %101 : vector<1x16x128xbf16> to vector<16x128xbf16>
      %c144 = arith.constant 144 : index
      %c0_62 = arith.constant 0 : index
      %104 = vector.load %arg10[%c144, %c0_62] : memref<160x384xbf16, #tpu.memory_space<vmem>>, vector<16x128xbf16>
      tpu.vector_store %arg10[%c144, %c0_62], %103 {strides = array<i32>} : memref<160x384xbf16, #tpu.memory_space<vmem>>, vector<16x128xbf16>,
      %105 = vector.shape_cast %100 : vector<1x16x128xbf16> to vector<16x128xbf16>
      %c144_63 = arith.constant 144 : index
      %c128_64 = arith.constant 128 : index
      %106 = vector.load %arg10[%c144_63, %c128_64] : memref<160x384xbf16, #tpu.memory_space<vmem>>, vector<16x128xbf16>
      tpu.vector_store %arg10[%c144_63, %c128_64], %105 {strides = array<i32>} : memref<160x384xbf16, #tpu.memory_space<vmem>>, vector<16x128xbf16>,
      %107 = vector.shape_cast %102 : vector<1x16x128xbf16> to vector<16x128xbf16>
      %c144_65 = arith.constant 144 : index
      %c256_66 = arith.constant 256 : index
      %108 = vector.load %arg10[%c144_65, %c256_66] : memref<160x384xbf16, #tpu.memory_space<vmem>>, vector<16x128xbf16>
      tpu.vector_store %arg10[%c144_65, %c256_66], %107 {strides = array<i32>} : memref<160x384xbf16, #tpu.memory_space<vmem>>, vector<16x128xbf16>,
    } else {
    }
    %c1_i32_20 = arith.constant 1 : i32
    %43 = arith.cmpi eq, %arg1, %c1_i32_20 : i32
    %44 = arith.extui %43 : i1 to i32
    %c0_i32_21 = arith.constant 0 : i32
    %45 = arith.cmpi ne, %44, %c0_i32_21 : i32
    scf.if %45 {
      %cst_49 = arith.constant 0.000000e+00 : bf16
      %77 = vector.broadcast %cst_49 : bf16 to vector<16x384xbf16>
      %c144 = arith.constant 144 : index
      %c0_50 = arith.constant 0 : index
      %78 = vector.load %arg10[%c144, %c0_50] : memref<160x384xbf16, #tpu.memory_space<vmem>>, vector<16x384xbf16>
      tpu.vector_store %arg10[%c144, %c0_50], %77 {strides = array<i32>} : memref<160x384xbf16, #tpu.memory_space<vmem>>, vector<16x384xbf16>,
    } else {
    }
    %c0_22 = arith.constant 0 : index
    %c0_23 = arith.constant 0 : index
    %46 = vector.load %arg10[%c0_22, %c0_23] : memref<160x384xbf16, #tpu.memory_space<vmem>>, vector<128x384xbf16>
    %c0_24 = arith.constant 0 : index
    %c0_25 = arith.constant 0 : index
    %c0_26 = arith.constant 0 : index
    %47 = vector.load %arg7[%c0_24, %c0_25, %c0_26] : memref<3x384x128xbf16, #tpu.memory_space<vmem>>, vector<1x384x128xbf16>
    %48 = vector.shape_cast %47 : vector<1x384x128xbf16> to vector<384x128xbf16>
    %cst_27 = arith.constant dense<0.000000e+00> : vector<128x128xf32>
    %49 = tpu.matmul %46, %48, %cst_27 {dimension_numbers = #tpu.dot_dimension_numbers<[1], [0], [0], [1], [0, 0, 1, 1], [], []>} : vector<128x384xbf16>, vector<384x128xbf16>, vector<128x128xf32> -> vector<128x128xf32>
    %c16_28 = arith.constant 16 : index
    %c0_29 = arith.constant 0 : index
    %50 = vector.load %arg10[%c16_28, %c0_29] : memref<160x384xbf16, #tpu.memory_space<vmem>>, vector<128x384xbf16>
    %c1 = arith.constant 1 : index
    %c0_30 = arith.constant 0 : index
    %c0_31 = arith.constant 0 : index
    %51 = vector.load %arg7[%c1, %c0_30, %c0_31] : memref<3x384x128xbf16, #tpu.memory_space<vmem>>, vector<1x384x128xbf16>
    %52 = vector.shape_cast %51 : vector<1x384x128xbf16> to vector<384x128xbf16>
    %cst_32 = arith.constant dense<0.000000e+00> : vector<128x128xf32>
    %53 = tpu.matmul %50, %52, %cst_32 {dimension_numbers = #tpu.dot_dimension_numbers<[1], [0], [0], [1], [0, 0, 1, 1], [], []>} : vector<128x384xbf16>, vector<384x128xbf16>, vector<128x128xf32> -> vector<128x128xf32>
    %54 = arith.addf %49, %53 : vector<128x128xf32>
    %c32 = arith.constant 32 : index
    %c0_33 = arith.constant 0 : index
    %55 = vector.load %arg10[%c32, %c0_33] : memref<160x384xbf16, #tpu.memory_space<vmem>>, vector<128x384xbf16>
    %c2 = arith.constant 2 : index
    %c0_34 = arith.constant 0 : index
    %c0_35 = arith.constant 0 : index
    %56 = vector.load %arg7[%c2, %c0_34, %c0_35] : memref<3x384x128xbf16, #tpu.memory_space<vmem>>, vector<1x384x128xbf16>
    %57 = vector.shape_cast %56 : vector<1x384x128xbf16> to vector<384x128xbf16>
    %cst_36 = arith.constant dense<0.000000e+00> : vector<128x128xf32>
    %58 = tpu.matmul %55, %57, %cst_36 {dimension_numbers = #tpu.dot_dimension_numbers<[1], [0], [0], [1], [0, 0, 1, 1], [], []>} : vector<128x384xbf16>, vector<384x128xbf16>, vector<128x128xf32> -> vector<128x128xf32>
    %59 = arith.addf %54, %58 : vector<128x128xf32>
    %c0_37 = arith.constant 0 : index
    %c0_38 = arith.constant 0 : index
    %60 = vector.load %arg8[%c0_37, %c0_38] : memref<1x128xf32, #tpu.memory_space<vmem>>, vector<1x128xf32>
    %61 = vector.broadcast %60 : vector<1x128xf32> to vector<128x128xf32>
    %62 = arith.addf %59, %61 : vector<128x128xf32>
    %cst_39 = arith.constant 0.000000e+00 : f32
    %63 = vector.broadcast %cst_39 : f32 to vector<128x128xf32>
    %64 = arith.cmpf ogt, %62, %63 : vector<128x128xf32>
    %cst_40 = arith.constant 1.000000e-01 : f32
    %65 = vector.broadcast %cst_40 : f32 to vector<128x128xf32>
    %66 = arith.mulf %65, %62 : vector<128x128xf32>
    %67 = arith.select %64, %62, %66 : vector<128x128xi1>, vector<128x128xf32>
    %68 = vector.shape_cast %67 : vector<128x128xf32> to vector<8x16x128xf32>
    %c0_41 = arith.constant 0 : index
    %c0_42 = arith.constant 0 : index
    %c0_43 = arith.constant 0 : index
    %c0_44 = arith.constant 0 : index
    %69 = vector.load %arg2[%c0_41, %c0_42, %c0_43, %c0_44] : memref<1x8x16x128xbf16, #tpu.memory_space<vmem>>, vector<1x8x16x128xbf16>
    %70 = vector.shape_cast %69 : vector<1x8x16x128xbf16> to vector<8x16x128xbf16>
    %71 = arith.extf %70 : vector<8x16x128xbf16> to vector<8x16x128xf32>
    %72 = arith.addf %68, %71 : vector<8x16x128xf32>
    %73 = arith.truncf %72 : vector<8x16x128xf32> to vector<8x16x128xbf16>
    %c0_45 = arith.constant 0 : index
    %c0_46 = arith.constant 0 : index
    %c0_47 = arith.constant 0 : index
    %c0_48 = arith.constant 0 : index
    %74 = vector.load %arg9[%c0_45, %c0_46, %c0_47, %c0_48] : memref<1x8x16x128xbf16, #tpu.memory_space<vmem>>, vector<1x8x16x128xbf16>
    %75 = vector.shape_cast %74 : vector<1x8x16x128xbf16> to vector<8x16x128xbf16>
    %76 = vector.shape_cast %73 : vector<8x16x128xbf16> to vector<1x8x16x128xbf16>
    tpu.vector_store %arg9[%c0_45, %c0_46, %c0_47, %c0_48], %76 {strides = array<i32>} : memref<1x8x16x128xbf16, #tpu.memory_space<vmem>>, vector<1x8x16x128xbf16>,
    return
  }
  func.func @transform_0(%arg0: i32, %arg1: i32) -> (i32, i32, i32, i32) {
    %c0_i32 = arith.constant 0 : i32
    %c0_i32_0 = arith.constant 0 : i32
    %c0_i32_1 = arith.constant 0 : i32
    return %arg0, %arg1, %c0_i32, %c0_i32_0 : i32, i32, i32, i32
  }
  func.func @transform_1(%arg0: i32, %arg1: i32) -> (i32, i32, i32, i32) {
    %c8_i32 = arith.constant 8 : i32
    %0 = arith.muli %arg1, %c8_i32 : i32
    %c1_i32 = arith.constant 1 : i32
    %1 = arith.subi %0, %c1_i32 : i32
    %c0_i32 = arith.constant 0 : i32
    %2 = arith.maxsi %1, %c0_i32 : i32
    %c0_i32_0 = arith.constant 0 : i32
    %c0_i32_1 = arith.constant 0 : i32
    %c0_i32_2 = arith.constant 0 : i32
    return %arg0, %2, %c0_i32_0, %c0_i32_1 : i32, i32, i32, i32
  }
  func.func @transform_2(%arg0: i32, %arg1: i32) -> (i32, i32, i32, i32) {
    %c1_i32 = arith.constant 1 : i32
    %0 = arith.addi %arg1, %c1_i32 : i32
    %c8_i32 = arith.constant 8 : i32
    %1 = arith.muli %0, %c8_i32 : i32
    %c15_i32 = arith.constant 15 : i32
    %2 = arith.minsi %1, %c15_i32 : i32
    %c0_i32 = arith.constant 0 : i32
    %c0_i32_0 = arith.constant 0 : i32
    %c0_i32_1 = arith.constant 0 : i32
    return %arg0, %2, %c0_i32, %c0_i32_0 : i32, i32, i32, i32
  }
  func.func @transform_3(%arg0: i32, %arg1: i32) -> (i32, i32) {
    %c0_i32 = arith.constant 0 : i32
    %c0_i32_0 = arith.constant 0 : i32
    %c0_i32_1 = arith.constant 0 : i32
    return %c0_i32, %c0_i32_0 : i32, i32
  }
  func.func @transform_4(%arg0: i32, %arg1: i32) -> (i32, i32) {
    %c0_i32 = arith.constant 0 : i32
    %c0_i32_0 = arith.constant 0 : i32
    %c0_i32_1 = arith.constant 0 : i32
    return %c0_i32, %c0_i32_0 : i32, i32
  }
  func.func @transform_5(%arg0: i32, %arg1: i32) -> (i32, i32, i32) {
    %c0_i32 = arith.constant 0 : i32
    %c0_i32_0 = arith.constant 0 : i32
    %c0_i32_1 = arith.constant 0 : i32
    %c0_i32_2 = arith.constant 0 : i32
    return %c0_i32, %c0_i32_0, %c0_i32_1 : i32, i32, i32
  }
  func.func @transform_6(%arg0: i32, %arg1: i32) -> (i32, i32) {
    %c0_i32 = arith.constant 0 : i32
    %c0_i32_0 = arith.constant 0 : i32
    %c0_i32_1 = arith.constant 0 : i32
    return %c0_i32, %c0_i32_0 : i32, i32
  }
  func.func @transform_7(%arg0: i32, %arg1: i32) -> (i32, i32, i32, i32) {
    %c0_i32 = arith.constant 0 : i32
    %c0_i32_0 = arith.constant 0 : i32
    %c0_i32_1 = arith.constant 0 : i32
    return %arg0, %arg1, %c0_i32, %c0_i32_0 : i32, i32, i32, i32
  }
}

</mosaic_0001>

<llo_original>
// kernel: _lambda_.2
$region0: #{_lambda_.2}
  #allocation0 [shape = 'u32[]', space=smem, size = 0x4, offset = 0x4, fixed_abs, tag = 'smem constant byte address 0x4 - core index']
  #allocation1 [shape = 'u32[144,128]{1,0:T(1,128)}', space=vmem, size = 0x12000, scoped, tag = 'internal scratch']
  #allocation2 [shape = 'bf16[160,384]{1,0:T(16,128)(2,1)}', space=vmem, size = 0x1e000, scoped, tag = 'scratch operand']
  %s0 = inlined_call_operand.vmem [shape: bf16[2,16,16,128], index: 0, kind: input, shape index: {}, may-alias: {0,1,2}]
  %s1 = inlined_call_operand.vmem [shape: bf16[2,16,16,128], index: 1, kind: input, shape index: {}, may-alias: {0,1,2}]
  %s2 = inlined_call_operand.vmem [shape: bf16[2,16,16,128], index: 2, kind: input, shape index: {}, may-alias: {0,1,2}]
  %s3 = inlined_call_operand.vmem [shape: bf16[128,128], index: 3, kind: input, shape index: {}]
  %s4 = inlined_call_operand.vmem [shape: f32[1,128], index: 4, kind: input, shape index: {}]
  %s5 = inlined_call_operand.vmem [shape: bf16[3,384,128], index: 5, kind: input, shape index: {}]
  %s6 = inlined_call_operand.vmem [shape: f32[1,128], index: 6, kind: input, shape index: {}]
  %s7 = inlined_call_operand.vmem [shape: bf16[2,16,16,128], index: 7, kind: output, shape index: {}]
  %s8 = sld [smem:[#allocation0]]
  $region77: #{_lambda_.2} parent=0
    _
  %s10 = ssub.s32 1, %s8
  %s11 = scalar_select 0, %s10, %s8
  loop: start=0, step=1, limit=6
  $region2: #{_lambda_.2} parent=0 // loop_pre_header
    _
  $region3: #{_lambda_.2} parent=0 // loop_header
    %s13 = sphi 0, %s17
    %p14 = scmp.ge.s32.totalorder %s13, 6
    %s20 = sphi 0, %s32
    %s21 = sphi 0, %s28
    %s22 = sphi 0, %s20
    %s23 = sphi 0, %s21
    %s24 = sphi 0, %s22
    %s25 = sphi 0, %s23
    %s37 = sphi 0, %s39
    %s40 = sphi 0, %s37
    %s41 = sphi 0, %s40
    %s57 = sphi 0, %s41
    %s73 = sphi 0, %s75
    %s76 = sphi 0, %s73
    %s77 = sphi 0, %s76
    %s93 = sphi 0, %s77
    %s109 = sphi 0, %s111
    %s112 = sphi 0, %s109
    %s113 = sphi 0, %s112
    %s129 = sphi 0, %s113
    %s133 = sphi 0, %s133
    %s135 = sphi 0, %s133
    %s136 = sphi 0, %s135
    %s150 = sphi 0, %s136
    %s154 = sphi 0, %s154
    %s156 = sphi 0, %s154
    %s157 = sphi 0, %s156
    %s171 = sphi 0, %s157
    %s175 = sphi 0, %s175
    %s177 = sphi 0, %s175
    %s178 = sphi 0, %s177
    %s192 = sphi 0, %s178
    %s196 = sphi 0, %s196
    %s198 = sphi 0, %s196
    %s199 = sphi 0, %s198
    %s213 = sphi 0, %s199
    %s221 = sphi 0, %s223
    %s224 = sphi 0, %s221
    %s225 = sphi 0, %s224
    %s241 = sphi 0, %s225
  $region4: #{_lambda_.2} parent=0 // loop_header_branch
    %16 = sbr.rel (%p14) target = $region8
  $region5: #{_lambda_.2} parent=0 // loop_body
    %s18 = ssub.s32 %s13, 1
    %s19 = ssub.s32 %s13, 2
    %s26 = sadd.s32 1, %s21
    %p27 = scmp.ge.s32.totalorder %s26, 2
    %s28 = scalar_select %p27, 0, %s26
    %s29 = sadd.s32 1, %s20
    %s30 = scalar_select %p27, %s29, %s20
    %p31 = scmp.ge.s32.totalorder %s30, 2
    %s32 = scalar_select %p31, 0, %s30
    %s33 = ssub.s32 %s20, %s32
    %s34 = ssub.s32 %s21, %s28
    %s35 = sor.u32 %s33, %s34
    %p36 = scmp.eq.s32.totalorder %s35, 0
    %s38 = sadd.s32 %s37, 1
    %s39 = scalar_select %p36, %s37, %s38
    %p42 = pneg %p36
    %p43 = scmp.eq.s32.totalorder %s13, 3
    %p44 = por %p42, %p43
    %p45 = scmp.ne.s32.totalorder %s37, %s40
    %p46 = scmp.eq.s32.totalorder %s13, 0
    %p47 = por %p45, %p46
    %p48 = scmp.ne.s32.totalorder %s37, %s40
    %p49 = scmp.eq.s32.totalorder %s18, 3
    %p50 = por %p48, %p49
    %p51 = scmp.ne.s32.totalorder %s40, %s41
    %p52 = scmp.eq.s32.totalorder %s18, 0
    %p53 = por %p51, %p52
    %p54 = scmp.ne.s32.totalorder %s40, %s41
    %p55 = scmp.eq.s32.totalorder %s19, 3
    %p56 = por %p54, %p55
    %p58 = scmp.ne.s32.totalorder %s41, %s57
    %p59 = scmp.eq.s32.totalorder %s19, 0
    %p60 = por %p58, %p59
    %s61 = smul.u32 %s21, 8
    %s62 = ssub.s32 %s61, 1
    %p63 = scmp.gt.s32.totalorder %s62, 0
    %s64 = scalar_select %p63, %s62, 0
    %s65 = smul.u32 %s28, 8
    %s66 = ssub.s32 %s65, 1
    %p67 = scmp.gt.s32.totalorder %s66, 0
    %s68 = scalar_select %p67, %s66, 0
    %s69 = ssub.s32 %s20, %s32
    %s70 = ssub.s32 %s64, %s68
    %s71 = sor.u32 %s69, %s70
    %p72 = scmp.eq.s32.totalorder %s71, 0
    %s74 = sadd.s32 %s73, 1
    %s75 = scalar_select %p72, %s73, %s74
    %p78 = pneg %p72
    %p79 = scmp.eq.s32.totalorder %s13, 3
    %p80 = por %p78, %p79
    %p81 = scmp.ne.s32.totalorder %s73, %s76
    %p82 = scmp.eq.s32.totalorder %s13, 0
    %p83 = por %p81, %p82
    %p84 = scmp.ne.s32.totalorder %s73, %s76
    %p85 = scmp.eq.s32.totalorder %s18, 3
    %p86 = por %p84, %p85
    %p87 = scmp.ne.s32.totalorder %s76, %s77
    %p88 = scmp.eq.s32.totalorder %s18, 0
    %p89 = por %p87, %p88
    %p90 = scmp.ne.s32.totalorder %s76, %s77
    %p91 = scmp.eq.s32.totalorder %s19, 3
    %p92 = por %p90, %p91
    %p94 = scmp.ne.s32.totalorder %s77, %s93
    %p95 = scmp.eq.s32.totalorder %s19, 0
    %p96 = por %p94, %p95
    %s97 = sadd.s32 %s21, 1
    %s98 = smul.u32 %s97, 8
    %p99 = scmp.lt.s32.totalorder %s98, 15
    %s100 = scalar_select %p99, %s98, 15
    %s101 = sadd.s32 %s28, 1
    %s102 = smul.u32 %s101, 8
    %p103 = scmp.lt.s32.totalorder %s102, 15
    %s104 = scalar_select %p103, %s102, 15
    %s105 = ssub.s32 %s20, %s32
    %s106 = ssub.s32 %s100, %s104
    %s107 = sor.u32 %s105, %s106
    %p108 = scmp.eq.s32.totalorder %s107, 0
    %s110 = sadd.s32 %s109, 1
    %s111 = scalar_select %p108, %s109, %s110
    %p114 = pneg %p108
    %p115 = scmp.eq.s32.totalorder %s13, 3
    %p116 = por %p114, %p115
    %p117 = scmp.ne.s32.totalorder %s109, %s112
    %p118 = scmp.eq.s32.totalorder %s13, 0
    %p119 = por %p117, %p118
    %p120 = scmp.ne.s32.totalorder %s109, %s112
    %p121 = scmp.eq.s32.totalorder %s18, 3
    %p122 = por %p120, %p121
    %p123 = scmp.ne.s32.totalorder %s112, %s113
    %p124 = scmp.eq.s32.totalorder %s18, 0
    %p125 = por %p123, %p124
    %p126 = scmp.ne.s32.totalorder %s112, %s113
    %p127 = scmp.eq.s32.totalorder %s19, 3
    %p128 = por %p126, %p127
    %p130 = scmp.ne.s32.totalorder %s113, %s129
    %p131 = scmp.eq.s32.totalorder %s19, 0
    %p132 = por %p130, %p131
    %s134 = sadd.s32 %s133, 1
    %p137 = scmp.eq.s32.totalorder %s13, 3
    %p138 = scmp.ne.s32.totalorder %s133, %s135
    %p139 = scmp.eq.s32.totalorder %s13, 0
    %p140 = por %p138, %p139
    %p141 = scmp.ne.s32.totalorder %s133, %s135
    %p142 = scmp.eq.s32.totalorder %s18, 3
    %p143 = por %p141, %p142
    %p144 = scmp.ne.s32.totalorder %s135, %s136
    %p145 = scmp.eq.s32.totalorder %s18, 0
    %p146 = por %p144, %p145
    %p147 = scmp.ne.s32.totalorder %s135, %s136
    %p148 = scmp.eq.s32.totalorder %s19, 3
    %p149 = por %p147, %p148
    %p151 = scmp.ne.s32.totalorder %s136, %s150
    %p152 = scmp.eq.s32.totalorder %s19, 0
    %p153 = por %p151, %p152
    %s155 = sadd.s32 %s154, 1
    %p158 = scmp.eq.s32.totalorder %s13, 3
    %p159 = scmp.ne.s32.totalorder %s154, %s156
    %p160 = scmp.eq.s32.totalorder %s13, 0
    %p161 = por %p159, %p160
    %p162 = scmp.ne.s32.totalorder %s154, %s156
    %p163 = scmp.eq.s32.totalorder %s18, 3
    %p164 = por %p162, %p163
    %p165 = scmp.ne.s32.totalorder %s156, %s157
    %p166 = scmp.eq.s32.totalorder %s18, 0
    %p167 = por %p165, %p166
    %p168 = scmp.ne.s32.totalorder %s156, %s157
    %p169 = scmp.eq.s32.totalorder %s19, 3
    %p170 = por %p168, %p169
    %p172 = scmp.ne.s32.totalorder %s157, %s171
    %p173 = scmp.eq.s32.totalorder %s19, 0
    %p174 = por %p172, %p173
    %s176 = sadd.s32 %s175, 1
    %p179 = scmp.eq.s32.totalorder %s13, 3
    %p180 = scmp.ne.s32.totalorder %s175, %s177
    %p181 = scmp.eq.s32.totalorder %s13, 0
    %p182 = por %p180, %p181
    %p183 = scmp.ne.s32.totalorder %s175, %s177
    %p184 = scmp.eq.s32.totalorder %s18, 3
    %p185 = por %p183, %p184
    %p186 = scmp.ne.s32.totalorder %s177, %s178
    %p187 = scmp.eq.s32.totalorder %s18, 0
    %p188 = por %p186, %p187
    %p189 = scmp.ne.s32.totalorder %s177, %s178
    %p190 = scmp.eq.s32.totalorder %s19, 3
    %p191 = por %p189, %p190
    %p193 = scmp.ne.s32.totalorder %s178, %s192
    %p194 = scmp.eq.s32.totalorder %s19, 0
    %p195 = por %p193, %p194
    %s197 = sadd.s32 %s196, 1
    %p200 = scmp.eq.s32.totalorder %s13, 3
    %p201 = scmp.ne.s32.totalorder %s196, %s198
    %p202 = scmp.eq.s32.totalorder %s13, 0
    %p203 = por %p201, %p202
    %p204 = scmp.ne.s32.totalorder %s196, %s198
    %p205 = scmp.eq.s32.totalorder %s18, 3
    %p206 = por %p204, %p205
    %p207 = scmp.ne.s32.totalorder %s198, %s199
    %p208 = scmp.eq.s32.totalorder %s18, 0
    %p209 = por %p207, %p208
    %p210 = scmp.ne.s32.totalorder %s198, %s199
    %p211 = scmp.eq.s32.totalorder %s19, 3
    %p212 = por %p210, %p211
    %p214 = scmp.ne.s32.totalorder %s199, %s213
    %p215 = scmp.eq.s32.totalorder %s19, 0
    %p216 = por %p214, %p215
    %s217 = ssub.s32 %s20, %s32
    %s218 = ssub.s32 %s21, %s28
    %s219 = sor.u32 %s217, %s218
    %p220 = scmp.eq.s32.totalorder %s219, 0
    %s222 = sadd.s32 %s221, 1
    %s223 = scalar_select %p220, %s221, %s222
    %p226 = pneg %p220
    %p227 = scmp.eq.s32.totalorder %s13, 3
    %p228 = por %p226, %p227
    %p229 = scmp.ne.s32.totalorder %s221, %s224
    %p230 = scmp.eq.s32.totalorder %s13, 0
    %p231 = por %p229, %p230
    %p232 = scmp.ne.s32.totalorder %s221, %s224
    %p233 = scmp.eq.s32.totalorder %s18, 3
    %p234 = por %p232, %p233
    %p235 = scmp.ne.s32.totalorder %s224, %s225
    %p236 = scmp.eq.s32.totalorder %s18, 0
    %p237 = por %p235, %p236
    %p238 = scmp.ne.s32.totalorder %s224, %s225
    %p239 = scmp.eq.s32.totalorder %s19, 3
    %p240 = por %p238, %p239
    %p242 = scmp.ne.s32.totalorder %s225, %s241
    %p243 = scmp.eq.s32.totalorder %s19, 0
    %p244 = por %p242, %p243
    %p245 = scmp.le.s32.totalorder 1, %s13
    %p246 = scmp.lt.s32.totalorder %s13, 5
    %p247 = pnand %p245, %p246
    %p248 = pneg %p247
    // Predicated region
    $region9: #{_lambda_.2} parent=5 // pred_check
      _
    $region10: #{_lambda_.2} parent=5 // pred_check_branch
      %250 = sbr.rel (%p247) target = $region12
    $region11: #{_lambda_.2} parent=5 // pred_region
      %s251 = ssub.s32 %s13, 1
      // Predicated region
      $region13: #{_lambda_.2} parent=11 // pred_check
        %p252 = pneg %p146
      $region14: #{_lambda_.2} parent=11 // pred_check_branch
        %254 = sbr.rel (%p252) target = $region16
      $region15: #{_lambda_.2} parent=11 // pred_region
        _
      $region16: #{_lambda_.2} parent=11 // pred_fallthru
        _
      // Predicated region
      $region17: #{_lambda_.2} parent=11 // pred_check
        %p255 = pneg %p167
      $region18: #{_lambda_.2} parent=11 // pred_check_branch
        %257 = sbr.rel (%p255) target = $region20
      $region19: #{_lambda_.2} parent=11 // pred_region
        _
      $region20: #{_lambda_.2} parent=11 // pred_fallthru
        _
      // Predicated region
      $region21: #{_lambda_.2} parent=11 // pred_check
        %p258 = pneg %p188
      $region22: #{_lambda_.2} parent=11 // pred_check_branch
        %260 = sbr.rel (%p258) target = $region24
      $region23: #{_lambda_.2} parent=11 // pred_region
        _
      $region24: #{_lambda_.2} parent=11 // pred_fallthru
        _
      // Predicated region
      $region25: #{_lambda_.2} parent=11 // pred_check
        %p261 = pneg %p209
      $region26: #{_lambda_.2} parent=11 // pred_check_branch
        %263 = sbr.rel (%p261) target = $region28
      $region27: #{_lambda_.2} parent=11 // pred_region
        _
      $region28: #{_lambda_.2} parent=11 // pred_fallthru
        _
    $region12: #{_lambda_.2} parent=5 // pred_fallthru
      _
    %p264 = scmp.lt.s32.totalorder %s13, 4
    // Predicated region
    $region29: #{_lambda_.2} parent=5 // pred_check
      %p265 = pneg %p264
    $region30: #{_lambda_.2} parent=5 // pred_check_branch
      %267 = sbr.rel (%p265) target = $region32
    $region31: #{_lambda_.2} parent=5 // pred_region
      // Predicated region
      $region33: #{_lambda_.2} parent=31 // pred_check
        %p268 = pneg %p47
      $region34: #{_lambda_.2} parent=31 // pred_check_branch
        %270 = sbr.rel (%p268) target = $region36
      $region35: #{_lambda_.2} parent=31 // pred_region
        %s271 = smul.u32 8, %s21
        %p272 = scmp.lt.s32.totalorder %s20, 1
        %s273 = scalar_select %p272, %s20, 1
        %p274 = scmp.lt.s32.totalorder %s271, 15
        %s275 = scalar_select %p274, %s271, 15
        %s276 = smul.addr %s275, 2
        %s277 = smul.addr %s273, 32
        %s278 = sadd.s32 %s276, %s277
        %s279 = smul.addr %s278, 4
        %s280 = scalar_lea.vmem %s0, %s279
        %s281 = smul.u32 8, %s21
      $region36: #{_lambda_.2} parent=31 // pred_fallthru
        _
      // Predicated region
      $region37: #{_lambda_.2} parent=31 // pred_check
        %p282 = pneg %p83
      $region38: #{_lambda_.2} parent=31 // pred_check_branch
        %284 = sbr.rel (%p282) target = $region40
      $region39: #{_lambda_.2} parent=31 // pred_region
        %s285 = smul.u32 %s21, 8
        %s286 = ssub.s32 %s285, 1
        %p287 = scmp.gt.s32.totalorder %s286, 0
        %s288 = scalar_select %p287, %s286, 0
        %p289 = scmp.lt.s32.totalorder %s20, 1
        %s290 = scalar_select %p289, %s20, 1
        %p291 = scmp.lt.s32.totalorder %s288, 15
        %s292 = scalar_select %p291, %s288, 15
        %s293 = smul.addr %s292, 2
        %s294 = smul.addr %s290, 32
        %s295 = sadd.s32 %s293, %s294
        %s296 = smul.addr %s295, 4
        %s297 = scalar_lea.vmem %s1, %s296
        %s298 = smul.u32 %s21, 8
        %s299 = ssub.s32 %s298, 1
        %p300 = scmp.gt.s32.totalorder %s299, 0
        %s301 = scalar_select %p300, %s299, 0
      $region40: #{_lambda_.2} parent=31 // pred_fallthru
        _
      // Predicated region
      $region41: #{_lambda_.2} parent=31 // pred_check
        %p302 = pneg %p119
      $region42: #{_lambda_.2} parent=31 // pred_check_branch
        %304 = sbr.rel (%p302) target = $region44
      $region43: #{_lambda_.2} parent=31 // pred_region
        %s305 = sadd.s32 %s21, 1
        %s306 = smul.u32 %s305, 8
        %p307 = scmp.lt.s32.totalorder %s306, 15
        %s308 = scalar_select %p307, %s306, 15
        %p309 = scmp.lt.s32.totalorder %s20, 1
        %s310 = scalar_select %p309, %s20, 1
        %p311 = scmp.lt.s32.totalorder %s308, 15
        %s312 = scalar_select %p311, %s308, 15
        %s313 = smul.addr %s312, 2
        %s314 = smul.addr %s310, 32
        %s315 = sadd.s32 %s313, %s314
        %s316 = smul.addr %s315, 4
        %s317 = scalar_lea.vmem %s2, %s316
        %s318 = sadd.s32 %s21, 1
        %s319 = smul.u32 %s318, 8
        %p320 = scmp.lt.s32.totalorder %s319, 15
        %s321 = scalar_select %p320, %s319, 15
      $region44: #{_lambda_.2} parent=31 // pred_fallthru
        _
    $region32: #{_lambda_.2} parent=5 // pred_fallthru
      _
    %p322 = scmp.le.s32.totalorder 1, %s13
    %p323 = scmp.lt.s32.totalorder %s13, 5
    %p324 = pnand %p322, %p323
    %p325 = pneg %p324
    // Predicated region
    $region45: #{_lambda_.2} parent=5 // pred_check
      _
    $region46: #{_lambda_.2} parent=5 // pred_check_branch
      %327 = sbr.rel (%p324) target = $region48
    $region47: #{_lambda_.2} parent=5 // pred_region
      %s328 = ssub.s32 %s13, 1
      %s329 = smul.u32 8, %s23
      %p330 = scmp.lt.s32.totalorder %s22, 1
      %s331 = scalar_select %p330, %s22, 1
      %p332 = scmp.lt.s32.totalorder %s329, 15
      %s333 = scalar_select %p332, %s329, 15
      %s334 = smul.addr %s333, 2
      %s335 = smul.addr %s331, 32
      %s336 = sadd.s32 %s334, %s335
      %s337 = smul.addr %s336, 4
      %s338 = scalar_lea.vmem %s0, %s337
      %p339 = pneg %p53
      %p340 = pneg %p50
      %s341 = smul.u32 %s23, 8
      %s342 = ssub.s32 %s341, 1
      %p343 = scmp.gt.s32.totalorder %s342, 0
      %s344 = scalar_select %p343, %s342, 0
      %p345 = scmp.lt.s32.totalorder %s22, 1
      %s346 = scalar_select %p345, %s22, 1
      %p347 = scmp.lt.s32.totalorder %s344, 15
      %s348 = scalar_select %p347, %s344, 15
      %s349 = smul.addr %s348, 2
      %s350 = smul.addr %s346, 32
      %s351 = sadd.s32 %s349, %s350
      %s352 = smul.addr %s351, 4
      %s353 = scalar_lea.vmem %s1, %s352
      %p354 = pneg %p89
      %p355 = pneg %p86
      %s356 = sadd.s32 %s23, 1
      %s357 = smul.u32 %s356, 8
      %p358 = scmp.lt.s32.totalorder %s357, 15
      %s359 = scalar_select %p358, %s357, 15
      %p360 = scmp.lt.s32.totalorder %s22, 1
      %s361 = scalar_select %p360, %s22, 1
      %p362 = scmp.lt.s32.totalorder %s359, 15
      %s363 = scalar_select %p362, %s359, 15
      %s364 = smul.addr %s363, 2
      %s365 = smul.addr %s361, 32
      %s366 = sadd.s32 %s364, %s365
      %s367 = smul.addr %s366, 4
      %s368 = scalar_lea.vmem %s2, %s367
      %p369 = pneg %p125
      %p370 = pneg %p122
      %p371 = pneg %p146
      %p372 = pneg %p143
      %p373 = pneg %p167
      %p374 = pneg %p164
      %p375 = pneg %p188
      %p376 = pneg %p185
      %p377 = pneg %p209
      %p378 = pneg %p206
      %p379 = pneg %p237
      %p380 = pneg %p234
      %s381 = smul.u32 8, %s23
      %p382 = scmp.lt.s32.totalorder %s22, 1
      %s383 = scalar_select %p382, %s22, 1
      %p384 = scmp.lt.s32.totalorder %s381, 15
      %s385 = scalar_select %p384, %s381, 15
      %s386 = smul.addr %s385, 2
      %s387 = smul.addr %s383, 32
      %s388 = sadd.s32 %s386, %s387
      %s389 = smul.addr %s388, 4
      %s390 = scalar_lea.vmem %s7, %s389
      %s391 = smul.u32 8, %s23
      %p392 = scmp.lt.s32.totalorder %s22, 1
      %s393 = scalar_select %p392, %s22, 1
      %p394 = scmp.lt.s32.totalorder %s391, 15
      %s395 = scalar_select %p394, %s391, 15
      %s396 = smul.addr %s395, 2
      %s397 = smul.addr %s393, 32
      %s398 = sadd.s32 %s396, %s397
      %s399 = smul.addr %s398, 4
      %s400 = scalar_lea.vmem %s0, %s399
      %s401 = smul.u32 8, %s23
      %s402 = smul.u32 %s23, 8
      %s403 = ssub.s32 %s402, 1
      %p404 = scmp.gt.s32.totalorder %s403, 0
      %s405 = scalar_select %p404, %s403, 0
      %p406 = scmp.lt.s32.totalorder %s22, 1
      %s407 = scalar_select %p406, %s22, 1
      %p408 = scmp.lt.s32.totalorder %s405, 15
      %s409 = scalar_select %p408, %s405, 15
      %s410 = smul.addr %s409, 2
      %s411 = smul.addr %s407, 32
      %s412 = sadd.s32 %s410, %s411
      %s413 = smul.addr %s412, 4
      %s414 = scalar_lea.vmem %s1, %s413
      %s415 = smul.u32 %s23, 8
      %s416 = ssub.s32 %s415, 1
      %p417 = scmp.gt.s32.totalorder %s416, 0
      %s418 = scalar_select %p417, %s416, 0
      %s419 = sadd.s32 %s23, 1
      %s420 = smul.u32 %s419, 8
      %p421 = scmp.lt.s32.totalorder %s420, 15
      %s422 = scalar_select %p421, %s420, 15
      %p423 = scmp.lt.s32.totalorder %s22, 1
      %s424 = scalar_select %p423, %s22, 1
      %p425 = scmp.lt.s32.totalorder %s422, 15
      %s426 = scalar_select %p425, %s422, 15
      %s427 = smul.addr %s426, 2
      %s428 = smul.addr %s424, 32
      %s429 = sadd.s32 %s427, %s428
      %s430 = smul.addr %s429, 4
      %s431 = scalar_lea.vmem %s2, %s430
      %s432 = sadd.s32 %s23, 1
      %s433 = smul.u32 %s432, 8
      %p434 = scmp.lt.s32.totalorder %s433, 15
      %s435 = scalar_select %p434, %s433, 15
      %s436 = smul.u32 8, %s23
      %p437 = scmp.lt.s32.totalorder %s22, 1
      %s438 = scalar_select %p437, %s22, 1
      %p439 = scmp.lt.s32.totalorder %s436, 15
      %s440 = scalar_select %p439, %s436, 15
      %s441 = smul.addr %s440, 2
      %s442 = smul.addr %s438, 32
      %s443 = sadd.s32 %s441, %s442
      %s444 = smul.addr %s443, 4
      %s445 = scalar_lea.vmem %s7, %s444
      %s446 = smul.u32 8, %s23
      %v448 = vld [vmem:[%s3] sm:$0xf]
      %v449 = vld [vmem:[%s3 + $0x4] sm:$0xf]
      %v450 = vld [vmem:[%s3 + $0x8] sm:$0xf]
      %v451 = vld [vmem:[%s3 + $0xc] sm:$0xf]
      %v452 = vld [vmem:[%s3 + $0x10] sm:$0xf]
      %v453 = vld [vmem:[%s3 + $0x14] sm:$0xf]
      %v454 = vld [vmem:[%s3 + $0x18] sm:$0xf]
      %v455 = vld [vmem:[%s3 + $0x1c] sm:$0xf]
      %v456 = vld [vmem:[%s3 + $0x20] sm:$0xf]
      %v457 = vld [vmem:[%s3 + $0x24] sm:$0xf]
      %v458 = vld [vmem:[%s3 + $0x28] sm:$0xf]
      %v459 = vld [vmem:[%s3 + $0x2c] sm:$0xf]
      %v460 = vld [vmem:[%s3 + $0x30] sm:$0xf]
      %v461 = vld [vmem:[%s3 + $0x34] sm:$0xf]
      %v462 = vld [vmem:[%s3 + $0x38] sm:$0xf]
      %v463 = vld [vmem:[%s3 + $0x3c] sm:$0xf]
      %v464 = vld [vmem:[%s4] sm:$0x1]
      %v465 = vld [vmem:[%s400] sm:$0xf]
      %v466 = vld [vmem:[%s400 + $0x4] sm:$0xf]
      %v467 = vld [vmem:[%s400 + $0x8] sm:$0xf]
      %v468 = vld [vmem:[%s400 + $0xc] sm:$0xf]
      %v469 = vld [vmem:[%s400 + $0x10] sm:$0xf]
      %v470 = vld [vmem:[%s400 + $0x14] sm:$0xf]
      %v471 = vld [vmem:[%s400 + $0x18] sm:$0xf]
      %v472 = vld [vmem:[%s400 + $0x1c] sm:$0xf]
      %v473 = vld [vmem:[%s400 + $0x20] sm:$0xf]
      %v474 = vld [vmem:[%s400 + $0x24] sm:$0xf]
      %v475 = vld [vmem:[%s400 + $0x28] sm:$0xf]
      %v476 = vld [vmem:[%s400 + $0x2c] sm:$0xf]
      %v477 = vld [vmem:[%s400 + $0x30] sm:$0xf]
      %v478 = vld [vmem:[%s400 + $0x34] sm:$0xf]
      %v479 = vld [vmem:[%s400 + $0x38] sm:$0xf]
      %v480 = vld [vmem:[%s400 + $0x3c] sm:$0xf]
      %v482 = vlaneseq
      %v483 = vshrl.u32 %v482, 7
      %v484 = vsub.s32 0, %v483
      %v485 = vrot.slane %v464, %v484
      %v503 = vunpack.c.l.b16 %v465
      %v504 = vunpack.c.l.b16 %v466
      %v505 = vunpack.c.l.b16 %v467
      %v506 = vunpack.c.l.b16 %v468
      %v507 = vunpack.c.l.b16 %v469
      %v508 = vunpack.c.l.b16 %v470
      %v509 = vunpack.c.l.b16 %v471
      %v510 = vunpack.c.l.b16 %v472
      %v511 = vunpack.c.l.b16 %v473
      %v512 = vunpack.c.l.b16 %v474
      %v513 = vunpack.c.l.b16 %v475
      %v514 = vunpack.c.l.b16 %v476
      %v515 = vunpack.c.l.b16 %v477
      %v516 = vunpack.c.l.b16 %v478
      %v517 = vunpack.c.l.b16 %v479
      %v518 = vunpack.c.l.b16 %v480
      %v519 = vpack.c.b16 %v504, %v503
      %v520 = vpack.c.b16 %v506, %v505
      %v521 = vpack.c.b16 %v508, %v507
      %v522 = vpack.c.b16 %v510, %v509
      %v523 = vpack.c.b16 %v512, %v511
      %v524 = vpack.c.b16 %v514, %v513
      %v525 = vpack.c.b16 %v516, %v515
      %v526 = vpack.c.b16 %v518, %v517
      %v551 = vunpack.c.l.b16 %v448
      %v552 = vunpack.c.l.b16 %v449
      %v553 = vunpack.c.l.b16 %v450
      %v554 = vunpack.c.l.b16 %v451
      %v555 = vunpack.c.l.b16 %v452
      %v556 = vunpack.c.l.b16 %v453
      %v557 = vunpack.c.l.b16 %v454
      %v558 = vunpack.c.l.b16 %v455
      %v559 = vunpack.c.l.b16 %v456
      %v560 = vunpack.c.l.b16 %v457
      %v561 = vunpack.c.l.b16 %v458
      %v562 = vunpack.c.l.b16 %v459
      %v563 = vunpack.c.l.b16 %v460
      %v564 = vunpack.c.l.b16 %v461
      %v565 = vunpack.c.l.b16 %v462
      %v566 = vunpack.c.l.b16 %v463
      %v567 = vpack.c.b16 %v552, %v551
      %v568 = vpack.c.b16 %v554, %v553
      %v569 = vpack.c.b16 %v556, %v555
      %v570 = vpack.c.b16 %v558, %v557
      %v571 = vpack.c.b16 %v560, %v559
      %v572 = vpack.c.b16 %v562, %v561
      %v573 = vpack.c.b16 %v564, %v563
      %v574 = vpack.c.b16 %v566, %v565
      %583 = vmatprep.subr.bf16.mxu0 0
      %584 = vmatpush1.bf16.msra.mxu0 %v567
      %585 = vmatprep.subr.bf16.mxu0 0
      %586 = vmatpush1.bf16.msra.mxu0 %v568
      %587 = vmatprep.subr.bf16.mxu0 0
      %588 = vmatpush1.bf16.msra.mxu0 %v569
      %589 = vmatprep.subr.bf16.mxu0 0
      %590 = vmatpush1.bf16.msra.mxu0 %v570
      %591 = vmatprep.subr.bf16.mxu0 0
      %592 = vmatpush1.bf16.msra.mxu0 %v571
      %593 = vmatprep.subr.bf16.mxu0 0
      %594 = vmatpush1.bf16.msra.mxu0 %v572
      %595 = vmatprep.subr.bf16.mxu0 0
      %596 = vmatpush1.bf16.msra.mxu0 %v573
      %597 = vmatprep.subr.bf16.mxu0 0
      %598 = vmatpush1.bf16.msra.mxu0 %v574
      %599 = vmatprep.subr.bf16.mxu0 0
      %600 = vmatpush1.bf16.msra.mxu0 0
      %601 = vmatprep.subr.bf16.mxu0 0
      %602 = vmatpush1.bf16.msra.mxu0 0
      %603 = vmatprep.subr.bf16.mxu0 0
      %604 = vmatpush1.bf16.msra.mxu0 0
      %605 = vmatprep.subr.bf16.mxu0 0
      %606 = vmatpush1.bf16.msra.mxu0 0
      %607 = vmatprep.subr.bf16.mxu0 0
      %608 = vmatpush1.bf16.msra.mxu0 0
      %609 = vmatprep.subr.bf16.mxu0 0
      %610 = vmatpush1.bf16.msra.mxu0 0
      %611 = vmatprep.subr.bf16.mxu0 0
      %612 = vmatpush1.bf16.msra.mxu0 0
      %613 = vmatprep.subr.bf16.mxu0 0
      %614 = vmatpush1.bf16.msra.mxu0 0
      %615 = vmatprep.mubr.bf16.mxu0 0
      %616 = vmatmul.mubr.bf16.gmra.mrb[0].mxu0 %v519
      %v617 = vpop.f32.mrb[0].mxu0
      %v618 = vadd.f32 %v485, %v617
      %v619 = vpop.f32.mrb[0].mxu0
      %v620 = vpop.f32.mrb[0].mxu0
      %v621 = vadd.f32 %v485, %v620
      %v622 = vpop.f32.mrb[0].mxu0
      %623 = vmatprep.mubr.bf16.mxu0 0
      %624 = vmatmul.mubr.bf16.gmra.mrb[0].mxu0 %v520
      %v625 = vpop.f32.mrb[0].mxu0
      %v626 = vadd.f32 %v485, %v625
      %v627 = vpop.f32.mrb[0].mxu0
      %v628 = vpop.f32.mrb[0].mxu0
      %v629 = vadd.f32 %v485, %v628
      %v630 = vpop.f32.mrb[0].mxu0
      %631 = vmatprep.mubr.bf16.mxu0 0
      %632 = vmatmul.mubr.bf16.gmra.mrb[0].mxu0 %v521
      %v633 = vpop.f32.mrb[0].mxu0
      %v634 = vadd.f32 %v485, %v633
      %v635 = vpop.f32.mrb[0].mxu0
      %v636 = vpop.f32.mrb[0].mxu0
      %v637 = vadd.f32 %v485, %v636
      %v638 = vpop.f32.mrb[0].mxu0
      %639 = vmatprep.mubr.bf16.mxu0 0
      %640 = vmatmul.mubr.bf16.gmra.mrb[0].mxu0 %v522
      %v641 = vpop.f32.mrb[0].mxu0
      %v642 = vadd.f32 %v485, %v641
      %v643 = vpop.f32.mrb[0].mxu0
      %v644 = vpop.f32.mrb[0].mxu0
      %v645 = vadd.f32 %v485, %v644
      %v646 = vpop.f32.mrb[0].mxu0
      %647 = vmatprep.mubr.bf16.mxu0 0
      %648 = vmatmul.mubr.bf16.gmra.mrb[0].mxu0 %v523
      %v649 = vpop.f32.mrb[0].mxu0
      %v650 = vadd.f32 %v485, %v649
      %v651 = vpop.f32.mrb[0].mxu0
      %v652 = vpop.f32.mrb[0].mxu0
      %v653 = vadd.f32 %v485, %v652
      %v654 = vpop.f32.mrb[0].mxu0
      %655 = vmatprep.mubr.bf16.mxu0 0
      %656 = vmatmul.mubr.bf16.gmra.mrb[0].mxu0 %v524
      %v657 = vpop.f32.mrb[0].mxu0
      %v658 = vadd.f32 %v485, %v657
      %v659 = vpop.f32.mrb[0].mxu0
      %v660 = vpop.f32.mrb[0].mxu0
      %v661 = vadd.f32 %v485, %v660
      %v662 = vpop.f32.mrb[0].mxu0
      %663 = vmatprep.mubr.bf16.mxu0 0
      %664 = vmatmul.mubr.bf16.gmra.mrb[0].mxu0 %v525
      %v665 = vpop.f32.mrb[0].mxu0
      %v666 = vadd.f32 %v485, %v665
      %v667 = vpop.f32.mrb[0].mxu0
      %v668 = vpop.f32.mrb[0].mxu0
      %v669 = vadd.f32 %v485, %v668
      %v670 = vpop.f32.mrb[0].mxu0
      %671 = vmatprep.mubr.bf16.mxu0 0
      %672 = vmatmul.mubr.bf16.gmra.mrb[0].mxu0 %v526
      %v673 = vpop.f32.mrb[0].mxu0
      %v674 = vadd.f32 %v485, %v673
      %v675 = vpop.f32.mrb[0].mxu0
      %v676 = vpop.f32.mrb[0].mxu0
      %v677 = vadd.f32 %v485, %v676
      %v678 = vpop.f32.mrb[0].mxu0
      %679 = vdwg.mxu0
      %vm680 = vcmp.gt.f32.partialorder %v618, 0.0
      %vm681 = vcmp.gt.f32.partialorder %v621, 0.0
      %vm682 = vcmp.gt.f32.partialorder %v626, 0.0
      %vm683 = vcmp.gt.f32.partialorder %v629, 0.0
      %vm684 = vcmp.gt.f32.partialorder %v634, 0.0
      %vm685 = vcmp.gt.f32.partialorder %v637, 0.0
      %vm686 = vcmp.gt.f32.partialorder %v642, 0.0
      %vm687 = vcmp.gt.f32.partialorder %v645, 0.0
      %vm688 = vcmp.gt.f32.partialorder %v650, 0.0
      %vm689 = vcmp.gt.f32.partialorder %v653, 0.0
      %vm690 = vcmp.gt.f32.partialorder %v658, 0.0
      %vm691 = vcmp.gt.f32.partialorder %v661, 0.0
      %vm692 = vcmp.gt.f32.partialorder %v666, 0.0
      %vm693 = vcmp.gt.f32.partialorder %v669, 0.0
      %vm694 = vcmp.gt.f32.partialorder %v674, 0.0
      %vm695 = vcmp.gt.f32.partialorder %v677, 0.0
      %v696 = vmul.f32 %v618, 0.1
      %v697 = vmul.f32 %v621, 0.1
      %v698 = vmul.f32 %v626, 0.1
      %v699 = vmul.f32 %v629, 0.1
      %v700 = vmul.f32 %v634, 0.1
      %v701 = vmul.f32 %v637, 0.1
      %v702 = vmul.f32 %v642, 0.1
      %v703 = vmul.f32 %v645, 0.1
      %v704 = vmul.f32 %v650, 0.1
      %v705 = vmul.f32 %v653, 0.1
      %v706 = vmul.f32 %v658, 0.1
      %v707 = vmul.f32 %v661, 0.1
      %v708 = vmul.f32 %v666, 0.1
      %v709 = vmul.f32 %v669, 0.1
      %v710 = vmul.f32 %v674, 0.1
      %v711 = vmul.f32 %v677, 0.1
      %v712 = vsel %vm680, %v618, %v696
      %v713 = vsel %vm681, %v621, %v697
      %v714 = vsel %vm682, %v626, %v698
      %v715 = vsel %vm683, %v629, %v699
      %v716 = vsel %vm684, %v634, %v700
      %v717 = vsel %vm685, %v637, %v701
      %v718 = vsel %vm686, %v642, %v702
      %v719 = vsel %vm687, %v645, %v703
      %v720 = vsel %vm688, %v650, %v704
      %v721 = vsel %vm689, %v653, %v705
      %v722 = vsel %vm690, %v658, %v706
      %v723 = vsel %vm691, %v661, %v707
      %v724 = vsel %vm692, %v666, %v708
      %v725 = vsel %vm693, %v669, %v709
      %v726 = vsel %vm694, %v674, %v710
      %v727 = vsel %vm695, %v677, %v711
      %v728 = vlaneseq
      %v729 = vshrl.u32 %v728, 7
      %v730 = vadd.s32 %v729, 8
      %vm731 = vcmp.ge.s32.totalorder %v729, 1
      %vm732 = vcmp.ge.s32.totalorder %v730, 1
      %v733 = vrot.slane %v712, 7
      %v734 = vrot.slane %v714, 7
      %v735 = vrot.slane %v716, 7
      %v736 = vrot.slane %v718, 7
      %v737 = vrot.slane %v720, 7
      %v738 = vrot.slane %v722, 7
      %v739 = vrot.slane %v724, 7
      %v740 = vrot.slane %v726, 7
      %v741 = vrot.slane %v713, 7
      %v742 = vrot.slane %v715, 7
      %v743 = vrot.slane %v717, 7
      %v744 = vrot.slane %v719, 7
      %v745 = vrot.slane %v721, 7
      %v746 = vrot.slane %v723, 7
      %v747 = vrot.slane %v725, 7
      %v748 = vrot.slane %v727, 7
      %vm749 = vcmp.lt.s32.totalorder %v729, 1
      %v750 = vsel %vm749, %v733, %v741
      %v751 = vsel %vm749, %v734, %v742
      %v752 = vsel %vm749, %v735, %v743
      %v753 = vsel %vm749, %v736, %v744
      %v754 = vsel %vm749, %v737, %v745
      %v755 = vsel %vm749, %v738, %v746
      %v756 = vsel %vm749, %v739, %v747
      %v757 = vsel %vm749, %v740, %v748
      %v758 = vsel %vm749, %v741, %v733
      %v759 = vsel %vm749, %v742, %v734
      %v760 = vsel %vm749, %v743, %v735
      %v761 = vsel %vm749, %v744, %v736
      %v762 = vsel %vm749, %v745, %v737
      %v763 = vsel %vm749, %v746, %v738
      %v764 = vsel %vm749, %v747, %v739
      %v765 = vsel %vm749, %v748, %v740
      %v766 = vsel %vm731, %v758, 0.0
      %v767 = vsel %vm732, %v750, 0.0
      %v768 = vsel %vm731, %v759, 0.0
      %v769 = vsel %vm732, %v751, 0.0
      %v770 = vsel %vm731, %v760, 0.0
      %v771 = vsel %vm732, %v752, 0.0
      %v772 = vsel %vm731, %v761, 0.0
      %v773 = vsel %vm732, %v753, 0.0
      %v774 = vsel %vm731, %v762, 0.0
      %v775 = vsel %vm732, %v754, 0.0
      %v776 = vsel %vm731, %v763, 0.0
      %v777 = vsel %vm732, %v755, 0.0
      %v778 = vsel %vm731, %v764, 0.0
      %v779 = vsel %vm732, %v756, 0.0
      %v780 = vsel %vm731, %v765, 0.0
      %v781 = vsel %vm732, %v757, 0.0
      %vm782 = vcmp.le.s32.totalorder %v729, 14
      %vm783 = vcmp.le.s32.totalorder %v730, 14
      %v784 = vrot.slane %v712, 1
      %v785 = vrot.slane %v714, 1
      %v786 = vrot.slane %v716, 1
      %v787 = vrot.slane %v718, 1
      %v788 = vrot.slane %v720, 1
      %v789 = vrot.slane %v722, 1
      %v790 = vrot.slane %v724, 1
      %v791 = vrot.slane %v726, 1
      %v792 = vrot.slane %v713, 1
      %v793 = vrot.slane %v715, 1
      %v794 = vrot.slane %v717, 1
      %v795 = vrot.slane %v719, 1
      %v796 = vrot.slane %v721, 1
      %v797 = vrot.slane %v723, 1
      %v798 = vrot.slane %v725, 1
      %v799 = vrot.slane %v727, 1
      %vm800 = vcmp.lt.s32.totalorder %v729, 7
      %v801 = vsel %vm800, %v784, %v792
      %v802 = vsel %vm800, %v785, %v793
      %v803 = vsel %vm800, %v786, %v794
      %v804 = vsel %vm800, %v787, %v795
      %v805 = vsel %vm800, %v788, %v796
      %v806 = vsel %vm800, %v789, %v797
      %v807 = vsel %vm800, %v790, %v798
      %v808 = vsel %vm800, %v791, %v799
      %v809 = vsel %vm800, %v792, %v784
      %v810 = vsel %vm800, %v793, %v785
      %v811 = vsel %vm800, %v794, %v786
      %v812 = vsel %vm800, %v795, %v787
      %v813 = vsel %vm800, %v796, %v788
      %v814 = vsel %vm800, %v797, %v789
      %v815 = vsel %vm800, %v798, %v790
      %v816 = vsel %vm800, %v799, %v791
      %v817 = vsel %vm782, %v801, 0.0
      %v818 = vsel %vm783, %v809, 0.0
      %v819 = vsel %vm782, %v802, 0.0
      %v820 = vsel %vm783, %v810, 0.0
      %v821 = vsel %vm782, %v803, 0.0
      %v822 = vsel %vm783, %v811, 0.0
      %v823 = vsel %vm782, %v804, 0.0
      %v824 = vsel %vm783, %v812, 0.0
      %v825 = vsel %vm782, %v805, 0.0
      %v826 = vsel %vm783, %v813, 0.0
      %v827 = vsel %vm782, %v806, 0.0
      %v828 = vsel %vm783, %v814, 0.0
      %v829 = vsel %vm782, %v807, 0.0
      %v830 = vsel %vm783, %v815, 0.0
      %v831 = vsel %vm782, %v808, 0.0
      %v832 = vsel %vm783, %v816, 0.0
      %v833 = vpack.c.bf16 %v713, %v712
      %v834 = vpack.c.bf16 %v715, %v714
      %v835 = vpack.c.bf16 %v717, %v716
      %v836 = vpack.c.bf16 %v719, %v718
      %v837 = vpack.c.bf16 %v721, %v720
      %v838 = vpack.c.bf16 %v723, %v722
      %v839 = vpack.c.bf16 %v725, %v724
      %v840 = vpack.c.bf16 %v727, %v726
      %v841 = vpack.c.bf16 %v767, %v766
      %v842 = vpack.c.bf16 %v769, %v768
      %v843 = vpack.c.bf16 %v771, %v770
      %v844 = vpack.c.bf16 %v773, %v772
      %v845 = vpack.c.bf16 %v775, %v774
      %v846 = vpack.c.bf16 %v777, %v776
      %v847 = vpack.c.bf16 %v779, %v778
      %v848 = vpack.c.bf16 %v781, %v780
      %v849 = vpack.c.bf16 %v818, %v817
      %v850 = vpack.c.bf16 %v820, %v819
      %v851 = vpack.c.bf16 %v822, %v821
      %v852 = vpack.c.bf16 %v824, %v823
      %v853 = vpack.c.bf16 %v826, %v825
      %v854 = vpack.c.bf16 %v828, %v827
      %v855 = vpack.c.bf16 %v830, %v829
      %v856 = vpack.c.bf16 %v832, %v831
      %857 = vst [vmem:[#allocation2 + $0x18] sm:$0xff] %v841
      %858 = vst [vmem:[#allocation2 + $0x30] sm:$0xff] %v842
      %859 = vst [vmem:[#allocation2 + $0x48] sm:$0xff] %v843
      %860 = vst [vmem:[#allocation2 + $0x60] sm:$0xff] %v844
      %861 = vst [vmem:[#allocation2 + $0x78] sm:$0xff] %v845
      %862 = vst [vmem:[#allocation2 + $0x90] sm:$0xff] %v846
      %863 = vst [vmem:[#allocation2 + $0xa8] sm:$0xff] %v847
      %864 = vst [vmem:[#allocation2 + $0xc0] sm:$0xff] %v848
      %865 = vst [vmem:[#allocation2 + $0x20] sm:$0xff] %v833
      %866 = vst [vmem:[#allocation2 + $0x38] sm:$0xff] %v834
      %867 = vst [vmem:[#allocation2 + $0x50] sm:$0xff] %v835
      %868 = vst [vmem:[#allocation2 + $0x68] sm:$0xff] %v836
      %869 = vst [vmem:[#allocation2 + $0x80] sm:$0xff] %v837
      %870 = vst [vmem:[#allocation2 + $0x98] sm:$0xff] %v838
      %871 = vst [vmem:[#allocation2 + $0xb0] sm:$0xff] %v839
      %872 = vst [vmem:[#allocation2 + $0xc8] sm:$0xff] %v840
      %873 = vst [vmem:[#allocation2 + $0x28] sm:$0xff] %v849
      %874 = vst [vmem:[#allocation2 + $0x40] sm:$0xff] %v850
      %875 = vst [vmem:[#allocation2 + $0x58] sm:$0xff] %v851
      %876 = vst [vmem:[#allocation2 + $0x70] sm:$0xff] %v852
      %877 = vst [vmem:[#allocation2 + $0x88] sm:$0xff] %v853
      %878 = vst [vmem:[#allocation2 + $0xa0] sm:$0xff] %v854
      %879 = vst [vmem:[#allocation2 + $0xb8] sm:$0xff] %v855
      %880 = vst [vmem:[#allocation2 + $0xd0] sm:$0xff] %v856
      %p881 = scmp.gt.s32.totalorder %s23, 0
      // Predicated region
      $region49: #{_lambda_.2} parent=47 // pred_check
        %p882 = pneg %p881
      $region50: #{_lambda_.2} parent=47 // pred_check_branch
        %884 = sbr.rel (%p882) target = $region52
      $region51: #{_lambda_.2} parent=47 // pred_region
        %v885 = vld [vmem:[%s414] sm:$0xf]
        %v886 = vld [vmem:[%s414 + $0x4] sm:$0xf]
        %v889 = vunpack.c.l.b16 %v885
        %v890 = vunpack.c.l.b16 %v886
        %v891 = vpack.c.b16 %v890, %v889
        %893 = vmatprep.subr.bf16.mxu0 0
        %894 = vmatpush1.bf16.msra.mxu0 %v567
        %895 = vmatprep.subr.bf16.mxu0 0
        %896 = vmatpush1.bf16.msra.mxu0 %v568
        %897 = vmatprep.subr.bf16.mxu0 0
        %898 = vmatpush1.bf16.msra.mxu0 %v569
        %899 = vmatprep.subr.bf16.mxu0 0
        %900 = vmatpush1.bf16.msra.mxu0 %v570
        %901 = vmatprep.subr.bf16.mxu0 0
        %902 = vmatpush1.bf16.msra.mxu0 %v571
        %903 = vmatprep.subr.bf16.mxu0 0
        %904 = vmatpush1.bf16.msra.mxu0 %v572
        %905 = vmatprep.subr.bf16.mxu0 0
        %906 = vmatpush1.bf16.msra.mxu0 %v573
        %907 = vmatprep.subr.bf16.mxu0 0
        %908 = vmatpush1.bf16.msra.mxu0 %v574
        %909 = vmatprep.subr.bf16.mxu0 0
        %910 = vmatpush1.bf16.msra.mxu0 0
        %911 = vmatprep.subr.bf16.mxu0 0
        %912 = vmatpush1.bf16.msra.mxu0 0
        %913 = vmatprep.subr.bf16.mxu0 0
        %914 = vmatpush1.bf16.msra.mxu0 0
        %915 = vmatprep.subr.bf16.mxu0 0
        %916 = vmatpush1.bf16.msra.mxu0 0
        %917 = vmatprep.subr.bf16.mxu0 0
        %918 = vmatpush1.bf16.msra.mxu0 0
        %919 = vmatprep.subr.bf16.mxu0 0
        %920 = vmatpush1.bf16.msra.mxu0 0
        %921 = vmatprep.subr.bf16.mxu0 0
        %922 = vmatpush1.bf16.msra.mxu0 0
        %923 = vmatprep.subr.bf16.mxu0 0
        %924 = vmatpush1.bf16.msra.mxu0 0
        %925 = vmatprep.mubr.bf16.mxu0 0
        %926 = vmatmul.mubr.bf16.gmra.mrb[0].mxu0 %v891
        %v927 = vpop.f32.mrb[0].mxu0
        %v928 = vadd.f32 %v485, %v927
        %v929 = vpop.f32.mrb[0].mxu0
        %v930 = vpop.f32.mrb[0].mxu0
        %v931 = vadd.f32 %v485, %v930
        %v932 = vpop.f32.mrb[0].mxu0
        %933 = vdwg.mxu0
        %vm934 = vcmp.gt.f32.partialorder %v928, 0.0
        %vm935 = vcmp.gt.f32.partialorder %v931, 0.0
        %v936 = vmul.f32 %v928, 0.1
        %v937 = vmul.f32 %v931, 0.1
        %v938 = vsel %vm934, %v928, %v936
        %v939 = vsel %vm935, %v931, %v937
        %v940 = vrot.slane %v938, 7
        %v941 = vrot.slane %v939, 7
        %v942 = vsel %vm749, %v940, %v941
        %v943 = vsel %vm749, %v941, %v940
        %v944 = vsel %vm731, %v943, 0.0
        %v945 = vsel %vm732, %v942, 0.0
        %v946 = vrot.slane %v938, 1
        %v947 = vrot.slane %v939, 1
        %v948 = vsel %vm800, %v946, %v947
        %v949 = vsel %vm800, %v947, %v946
        %v950 = vsel %vm782, %v948, 0.0
        %v951 = vsel %vm783, %v949, 0.0
        %v952 = vpack.c.bf16 %v939, %v938
        %v953 = vpack.c.bf16 %v945, %v944
        %v954 = vpack.c.bf16 %v951, %v950
        %955 = vst [vmem:[#allocation2] sm:$0xff] %v953
        %956 = vst [vmem:[#allocation2 + $0x8] sm:$0xff] %v952
        %957 = vst [vmem:[#allocation2 + $0x10] sm:$0xff] %v954
      $region52: #{_lambda_.2} parent=47 // pred_fallthru
        _
      %p958 = scmp.eq.s32.totalorder %s23, 0
      // Predicated region
      $region53: #{_lambda_.2} parent=47 // pred_check
        %p959 = pneg %p958
      $region54: #{_lambda_.2} parent=47 // pred_check_branch
        %961 = sbr.rel (%p959) target = $region56
      $region55: #{_lambda_.2} parent=47 // pred_region
        %962 = vst [vmem:[#allocation2] sm:$0xff] 0
        %963 = vst [vmem:[#allocation2 + $0x8] sm:$0xff] 0
        %964 = vst [vmem:[#allocation2 + $0x10] sm:$0xff] 0
      $region56: #{_lambda_.2} parent=47 // pred_fallthru
        _
      %p965 = scmp.lt.s32.totalorder %s23, 1
      // Predicated region
      $region57: #{_lambda_.2} parent=47 // pred_check
        %p966 = pneg %p965
      $region58: #{_lambda_.2} parent=47 // pred_check_branch
        %968 = sbr.rel (%p966) target = $region60
      $region59: #{_lambda_.2} parent=47 // pred_region
        %v969 = vld [vmem:[%s431] sm:$0xf]
        %v970 = vld [vmem:[%s431 + $0x4] sm:$0xf]
        %v973 = vunpack.c.l.b16 %v969
        %v974 = vunpack.c.l.b16 %v970
        %v975 = vpack.c.b16 %v974, %v973
        %977 = vmatprep.subr.bf16.mxu0 0
        %978 = vmatpush1.bf16.msra.mxu0 %v567
        %979 = vmatprep.subr.bf16.mxu0 0
        %980 = vmatpush1.bf16.msra.mxu0 %v568
        %981 = vmatprep.subr.bf16.mxu0 0
        %982 = vmatpush1.bf16.msra.mxu0 %v569
        %983 = vmatprep.subr.bf16.mxu0 0
        %984 = vmatpush1.bf16.msra.mxu0 %v570
        %985 = vmatprep.subr.bf16.mxu0 0
        %986 = vmatpush1.bf16.msra.mxu0 %v571
        %987 = vmatprep.subr.bf16.mxu0 0
        %988 = vmatpush1.bf16.msra.mxu0 %v572
        %989 = vmatprep.subr.bf16.mxu0 0
        %990 = vmatpush1.bf16.msra.mxu0 %v573
        %991 = vmatprep.subr.bf16.mxu0 0
        %992 = vmatpush1.bf16.msra.mxu0 %v574
        %993 = vmatprep.subr.bf16.mxu0 0
        %994 = vmatpush1.bf16.msra.mxu0 0
        %995 = vmatprep.subr.bf16.mxu0 0
        %996 = vmatpush1.bf16.msra.mxu0 0
        %997 = vmatprep.subr.bf16.mxu0 0
        %998 = vmatpush1.bf16.msra.mxu0 0
        %999 = vmatprep.subr.bf16.mxu0 0
        %1000 = vmatpush1.bf16.msra.mxu0 0
        %1001 = vmatprep.subr.bf16.mxu0 0
        %1002 = vmatpush1.bf16.msra.mxu0 0
        %1003 = vmatprep.subr.bf16.mxu0 0
        %1004 = vmatpush1.bf16.msra.mxu0 0
        %1005 = vmatprep.subr.bf16.mxu0 0
        %1006 = vmatpush1.bf16.msra.mxu0 0
        %1007 = vmatprep.subr.bf16.mxu0 0
        %1008 = vmatpush1.bf16.msra.mxu0 0
        %1009 = vmatprep.mubr.bf16.mxu0 0
        %1010 = vmatmul.mubr.bf16.gmra.mrb[0].mxu0 %v975
        %v1011 = vpop.f32.mrb[0].mxu0
        %v1012 = vadd.f32 %v485, %v1011
        %v1013 = vpop.f32.mrb[0].mxu0
        %v1014 = vpop.f32.mrb[0].mxu0
        %v1015 = vadd.f32 %v485, %v1014
        %v1016 = vpop.f32.mrb[0].mxu0
        %1017 = vdwg.mxu0
        %vm1018 = vcmp.gt.f32.partialorder %v1012, 0.0
        %vm1019 = vcmp.gt.f32.partialorder %v1015, 0.0
        %v1020 = vmul.f32 %v1012, 0.1
        %v1021 = vmul.f32 %v1015, 0.1
        %v1022 = vsel %vm1018, %v1012, %v1020
        %v1023 = vsel %vm1019, %v1015, %v1021
        %v1024 = vrot.slane %v1022, 7
        %v1025 = vrot.slane %v1023, 7
        %v1026 = vsel %vm749, %v1024, %v1025
        %v1027 = vsel %vm749, %v1025, %v1024
        %v1028 = vsel %vm731, %v1027, 0.0
        %v1029 = vsel %vm732, %v1026, 0.0
        %v1030 = vrot.slane %v1022, 1
        %v1031 = vrot.slane %v1023, 1
        %v1032 = vsel %vm800, %v1030, %v1031
        %v1033 = vsel %vm800, %v1031, %v1030
        %v1034 = vsel %vm782, %v1032, 0.0
        %v1035 = vsel %vm783, %v1033, 0.0
        %v1036 = vpack.c.bf16 %v1023, %v1022
        %v1037 = vpack.c.bf16 %v1029, %v1028
        %v1038 = vpack.c.bf16 %v1035, %v1034
        %1039 = vst [vmem:[#allocation2 + $0xd8] sm:$0xff] %v1037
        %1040 = vst [vmem:[#allocation2 + $0xe0] sm:$0xff] %v1036
        %1041 = vst [vmem:[#allocation2 + $0xe8] sm:$0xff] %v1038
      $region60: #{_lambda_.2} parent=47 // pred_fallthru
        _
      %p1042 = scmp.eq.s32.totalorder %s23, 1
      // Predicated region
      $region61: #{_lambda_.2} parent=47 // pred_check
        %p1043 = pneg %p1042
      $region62: #{_lambda_.2} parent=47 // pred_check_branch
        %1045 = sbr.rel (%p1043) target = $region64
      $region63: #{_lambda_.2} parent=47 // pred_region
        %1046 = vst [vmem:[#allocation2 + $0xd8] sm:$0xff] 0
        %1047 = vst [vmem:[#allocation2 + $0xe0] sm:$0xff] 0
        %1048 = vst [vmem:[#allocation2 + $0xe8] sm:$0xff] 0
      $region64: #{_lambda_.2} parent=47 // pred_fallthru
        _
      %v1049 = vld [vmem:[#allocation2] sm:$0xff]
      %v1050 = vld [vmem:[#allocation2 + $0x8] sm:$0xff]
      %v1051 = vld [vmem:[#allocation2 + $0x10] sm:$0xff]
      %v1052 = vld [vmem:[#allocation2 + $0x18] sm:$0xff]
      %v1053 = vld [vmem:[#allocation2 + $0x20] sm:$0xff]
      %v1054 = vld [vmem:[#allocation2 + $0x28] sm:$0xff]
      %v1055 = vld [vmem:[#allocation2 + $0x30] sm:$0xff]
      %v1056 = vld [vmem:[#allocation2 + $0x38] sm:$0xff]
      %v1057 = vld [vmem:[#allocation2 + $0x40] sm:$0xff]
      %v1058 = vld [vmem:[#allocation2 + $0x48] sm:$0xff]
      %v1059 = vld [vmem:[#allocation2 + $0x50] sm:$0xff]
      %v1060 = vld [vmem:[#allocation2 + $0x58] sm:$0xff]
      %v1061 = vld [vmem:[#allocation2 + $0x60] sm:$0xff]
      %v1062 = vld [vmem:[#allocation2 + $0x68] sm:$0xff]
      %v1063 = vld [vmem:[#allocation2 + $0x70] sm:$0xff]
      %v1064 = vld [vmem:[#allocation2 + $0x78] sm:$0xff]
      %v1065 = vld [vmem:[#allocation2 + $0x80] sm:$0xff]
      %v1066 = vld [vmem:[#allocation2 + $0x88] sm:$0xff]
      %v1067 = vld [vmem:[#allocation2 + $0x90] sm:$0xff]
      %v1068 = vld [vmem:[#allocation2 + $0x98] sm:$0xff]
      %v1069 = vld [vmem:[#allocation2 + $0xa0] sm:$0xff]
      %v1070 = vld [vmem:[#allocation2 + $0xa8] sm:$0xff]
      %v1071 = vld [vmem:[#allocation2 + $0xb0] sm:$0xff]
      %v1072 = vld [vmem:[#allocation2 + $0xb8] sm:$0xff]
      %v1073 = vld [vmem:[%s5] sm:$0xf]
      %v1074 = vld [vmem:[%s5 + $0x4] sm:$0xf]
      %v1075 = vld [vmem:[%s5 + $0x8] sm:$0xf]
      %v1076 = vld [vmem:[%s5 + $0xc] sm:$0xf]
      %v1077 = vld [vmem:[%s5 + $0x10] sm:$0xf]
      %v1078 = vld [vmem:[%s5 + $0x14] sm:$0xf]
      %v1079 = vld [vmem:[%s5 + $0x18] sm:$0xf]
      %v1080 = vld [vmem:[%s5 + $0x1c] sm:$0xf]
      %v1081 = vld [vmem:[%s5 + $0x20] sm:$0xf]
      %v1082 = vld [vmem:[%s5 + $0x24] sm:$0xf]
      %v1083 = vld [vmem:[%s5 + $0x28] sm:$0xf]
      %v1084 = vld [vmem:[%s5 + $0x2c] sm:$0xf]
      %v1085 = vld [vmem:[%s5 + $0x30] sm:$0xf]
      %v1086 = vld [vmem:[%s5 + $0x34] sm:$0xf]
      %v1087 = vld [vmem:[%s5 + $0x38] sm:$0xf]
      %v1088 = vld [vmem:[%s5 + $0x3c] sm:$0xf]
      %v1089 = vld [vmem:[%s5 + $0x40] sm:$0xf]
      %v1090 = vld [vmem:[%s5 + $0x44] sm:$0xf]
      %v1091 = vld [vmem:[%s5 + $0x48] sm:$0xf]
      %v1092 = vld [vmem:[%s5 + $0x4c] sm:$0xf]
      %v1093 = vld [vmem:[%s5 + $0x50] sm:$0xf]
      %v1094 = vld [vmem:[%s5 + $0x54] sm:$0xf]
      %v1095 = vld [vmem:[%s5 + $0x58] sm:$0xf]
      %v1096 = vld [vmem:[%s5 + $0x5c] sm:$0xf]
      %v1097 = vld [vmem:[%s5 + $0x60] sm:$0xf]
      %v1098 = vld [vmem:[%s5 + $0x64] sm:$0xf]
      %v1099 = vld [vmem:[%s5 + $0x68] sm:$0xf]
      %v1100 = vld [vmem:[%s5 + $0x6c] sm:$0xf]
      %v1101 = vld [vmem:[%s5 + $0x70] sm:$0xf]
      %v1102 = vld [vmem:[%s5 + $0x74] sm:$0xf]
      %v1103 = vld [vmem:[%s5 + $0x78] sm:$0xf]
      %v1104 = vld [vmem:[%s5 + $0x7c] sm:$0xf]
      %v1105 = vld [vmem:[%s5 + $0x80] sm:$0xf]
      %v1106 = vld [vmem:[%s5 + $0x84] sm:$0xf]
      %v1107 = vld [vmem:[%s5 + $0x88] sm:$0xf]
      %v1108 = vld [vmem:[%s5 + $0x8c] sm:$0xf]
      %v1109 = vld [vmem:[%s5 + $0x90] sm:$0xf]
      %v1110 = vld [vmem:[%s5 + $0x94] sm:$0xf]
      %v1111 = vld [vmem:[%s5 + $0x98] sm:$0xf]
      %v1112 = vld [vmem:[%s5 + $0x9c] sm:$0xf]
      %v1113 = vld [vmem:[%s5 + $0xa0] sm:$0xf]
      %v1114 = vld [vmem:[%s5 + $0xa4] sm:$0xf]
      %v1115 = vld [vmem:[%s5 + $0xa8] sm:$0xf]
      %v1116 = vld [vmem:[%s5 + $0xac] sm:$0xf]
      %v1117 = vld [vmem:[%s5 + $0xb0] sm:$0xf]
      %v1118 = vld [vmem:[%s5 + $0xb4] sm:$0xf]
      %v1119 = vld [vmem:[%s5 + $0xb8] sm:$0xf]
      %v1120 = vld [vmem:[%s5 + $0xbc] sm:$0xf]
      %v1121 = vld [vmem:[#allocation2 + $0xc0] sm:$0xff]
      %v1122 = vld [vmem:[#allocation2 + $0xc8] sm:$0xff]
      %v1123 = vld [vmem:[#allocation2 + $0xd0] sm:$0xff]
      %s1124 = scalar_lea.vmem %s5, 192
      %v1125 = vld [vmem:[%s1124] sm:$0xf]
      %v1126 = vld [vmem:[%s1124 + $0x4] sm:$0xf]
      %v1127 = vld [vmem:[%s1124 + $0x8] sm:$0xf]
      %v1128 = vld [vmem:[%s1124 + $0xc] sm:$0xf]
      %v1129 = vld [vmem:[%s1124 + $0x10] sm:$0xf]
      %v1130 = vld [vmem:[%s1124 + $0x14] sm:$0xf]
      %v1131 = vld [vmem:[%s1124 + $0x18] sm:$0xf]
      %v1132 = vld [vmem:[%s1124 + $0x1c] sm:$0xf]
      %v1133 = vld [vmem:[%s1124 + $0x20] sm:$0xf]
      %v1134 = vld [vmem:[%s1124 + $0x24] sm:$0xf]
      %v1135 = vld [vmem:[%s1124 + $0x28] sm:$0xf]
      %v1136 = vld [vmem:[%s1124 + $0x2c] sm:$0xf]
      %v1137 = vld [vmem:[%s1124 + $0x30] sm:$0xf]
      %v1138 = vld [vmem:[%s1124 + $0x34] sm:$0xf]
      %v1139 = vld [vmem:[%s1124 + $0x38] sm:$0xf]
      %v1140 = vld [vmem:[%s1124 + $0x3c] sm:$0xf]
      %v1141 = vld [vmem:[%s1124 + $0x40] sm:$0xf]
      %v1142 = vld [vmem:[%s1124 + $0x44] sm:$0xf]
      %v1143 = vld [vmem:[%s1124 + $0x48] sm:$0xf]
      %v1144 = vld [vmem:[%s1124 + $0x4c] sm:$0xf]
      %v1145 = vld [vmem:[%s1124 + $0x50] sm:$0xf]
      %v1146 = vld [vmem:[%s1124 + $0x54] sm:$0xf]
      %v1147 = vld [vmem:[%s1124 + $0x58] sm:$0xf]
      %v1148 = vld [vmem:[%s1124 + $0x5c] sm:$0xf]
      %v1149 = vld [vmem:[%s1124 + $0x60] sm:$0xf]
      %v1150 = vld [vmem:[%s1124 + $0x64] sm:$0xf]
      %v1151 = vld [vmem:[%s1124 + $0x68] sm:$0xf]
      %v1152 = vld [vmem:[%s1124 + $0x6c] sm:$0xf]
      %v1153 = vld [vmem:[%s1124 + $0x70] sm:$0xf]
      %v1154 = vld [vmem:[%s1124 + $0x74] sm:$0xf]
      %v1155 = vld [vmem:[%s1124 + $0x78] sm:$0xf]
      %v1156 = vld [vmem:[%s1124 + $0x7c] sm:$0xf]
      %v1157 = vld [vmem:[%s1124 + $0x80] sm:$0xf]
      %v1158 = vld [vmem:[%s1124 + $0x84] sm:$0xf]
      %v1159 = vld [vmem:[%s1124 + $0x88] sm:$0xf]
      %v1160 = vld [vmem:[%s1124 + $0x8c] sm:$0xf]
      %v1161 = vld [vmem:[%s1124 + $0x90] sm:$0xf]
      %v1162 = vld [vmem:[%s1124 + $0x94] sm:$0xf]
      %v1163 = vld [vmem:[%s1124 + $0x98] sm:$0xf]
      %v1164 = vld [vmem:[%s1124 + $0x9c] sm:$0xf]
      %v1165 = vld [vmem:[%s1124 + $0xa0] sm:$0xf]
      %v1166 = vld [vmem:[%s1124 + $0xa4] sm:$0xf]
      %v1167 = vld [vmem:[%s1124 + $0xa8] sm:$0xf]
      %v1168 = vld [vmem:[%s1124 + $0xac] sm:$0xf]
      %v1169 = vld [vmem:[%s1124 + $0xb0] sm:$0xf]
      %v1170 = vld [vmem:[%s1124 + $0xb4] sm:$0xf]
      %v1171 = vld [vmem:[%s1124 + $0xb8] sm:$0xf]
      %v1172 = vld [vmem:[%s1124 + $0xbc] sm:$0xf]
      %v1221 = vunpack.c.l.b16 %v1125
      %v1222 = vunpack.c.l.b16 %v1126
      %v1223 = vunpack.c.l.b16 %v1127
      %v1224 = vunpack.c.l.b16 %v1128
      %v1225 = vunpack.c.l.b16 %v1129
      %v1226 = vunpack.c.l.b16 %v1130
      %v1227 = vunpack.c.l.b16 %v1131
      %v1228 = vunpack.c.l.b16 %v1132
      %v1229 = vunpack.c.l.b16 %v1133
      %v1230 = vunpack.c.l.b16 %v1134
      %v1231 = vunpack.c.l.b16 %v1135
      %v1232 = vunpack.c.l.b16 %v1136
      %v1233 = vunpack.c.l.b16 %v1137
      %v1234 = vunpack.c.l.b16 %v1138
      %v1235 = vunpack.c.l.b16 %v1139
      %v1236 = vunpack.c.l.b16 %v1140
      %v1237 = vunpack.c.l.b16 %v1141
      %v1238 = vunpack.c.l.b16 %v1142
      %v1239 = vunpack.c.l.b16 %v1143
      %v1240 = vunpack.c.l.b16 %v1144
      %v1241 = vunpack.c.l.b16 %v1145
      %v1242 = vunpack.c.l.b16 %v1146
      %v1243 = vunpack.c.l.b16 %v1147
      %v1244 = vunpack.c.l.b16 %v1148
      %v1245 = vunpack.c.l.b16 %v1149
      %v1246 = vunpack.c.l.b16 %v1150
      %v1247 = vunpack.c.l.b16 %v1151
      %v1248 = vunpack.c.l.b16 %v1152
      %v1249 = vunpack.c.l.b16 %v1153
      %v1250 = vunpack.c.l.b16 %v1154
      %v1251 = vunpack.c.l.b16 %v1155
      %v1252 = vunpack.c.l.b16 %v1156
      %v1253 = vunpack.c.l.b16 %v1157
      %v1254 = vunpack.c.l.b16 %v1158
      %v1255 = vunpack.c.l.b16 %v1159
      %v1256 = vunpack.c.l.b16 %v1160
      %v1257 = vunpack.c.l.b16 %v1161
      %v1258 = vunpack.c.l.b16 %v1162
      %v1259 = vunpack.c.l.b16 %v1163
      %v1260 = vunpack.c.l.b16 %v1164
      %v1261 = vunpack.c.l.b16 %v1165
      %v1262 = vunpack.c.l.b16 %v1166
      %v1263 = vunpack.c.l.b16 %v1167
      %v1264 = vunpack.c.l.b16 %v1168
      %v1265 = vunpack.c.l.b16 %v1169
      %v1266 = vunpack.c.l.b16 %v1170
      %v1267 = vunpack.c.l.b16 %v1171
      %v1268 = vunpack.c.l.b16 %v1172
      %v1269 = vpack.c.b16 %v1222, %v1221
      %v1270 = vpack.c.b16 %v1224, %v1223
      %v1271 = vpack.c.b16 %v1226, %v1225
      %v1272 = vpack.c.b16 %v1228, %v1227
      %v1273 = vpack.c.b16 %v1230, %v1229
      %v1274 = vpack.c.b16 %v1232, %v1231
      %v1275 = vpack.c.b16 %v1234, %v1233
      %v1276 = vpack.c.b16 %v1236, %v1235
      %v1277 = vpack.c.b16 %v1238, %v1237
      %v1278 = vpack.c.b16 %v1240, %v1239
      %v1279 = vpack.c.b16 %v1242, %v1241
      %v1280 = vpack.c.b16 %v1244, %v1243
      %v1281 = vpack.c.b16 %v1246, %v1245
      %v1282 = vpack.c.b16 %v1248, %v1247
      %v1283 = vpack.c.b16 %v1250, %v1249
      %v1284 = vpack.c.b16 %v1252, %v1251
      %v1285 = vpack.c.b16 %v1254, %v1253
      %v1286 = vpack.c.b16 %v1256, %v1255
      %v1287 = vpack.c.b16 %v1258, %v1257
      %v1288 = vpack.c.b16 %v1260, %v1259
      %v1289 = vpack.c.b16 %v1262, %v1261
      %v1290 = vpack.c.b16 %v1264, %v1263
      %v1291 = vpack.c.b16 %v1266, %v1265
      %v1292 = vpack.c.b16 %v1268, %v1267
      %1317 = vmatprep.subr.bf16.mxu0 0
      %1318 = vmatpush1.bf16.msra.mxu0 %v1269
      %1319 = vmatprep.subr.bf16.mxu0 0
      %1320 = vmatpush1.bf16.msra.mxu0 %v1270
      %1321 = vmatprep.subr.bf16.mxu0 0
      %1322 = vmatpush1.bf16.msra.mxu0 %v1271
      %1323 = vmatprep.subr.bf16.mxu0 0
      %1324 = vmatpush1.bf16.msra.mxu0 %v1272
      %1325 = vmatprep.subr.bf16.mxu0 0
      %1326 = vmatpush1.bf16.msra.mxu0 %v1273
      %1327 = vmatprep.subr.bf16.mxu0 0
      %1328 = vmatpush1.bf16.msra.mxu0 %v1274
      %1329 = vmatprep.subr.bf16.mxu0 0
      %1330 = vmatpush1.bf16.msra.mxu0 %v1275
      %1331 = vmatprep.subr.bf16.mxu0 0
      %1332 = vmatpush1.bf16.msra.mxu0 %v1276
      %1333 = vmatprep.subr.bf16.mxu0 0
      %1334 = vmatpush1.bf16.msra.mxu0 %v1277
      %1335 = vmatprep.subr.bf16.mxu0 0
      %1336 = vmatpush1.bf16.msra.mxu0 %v1278
      %1337 = vmatprep.subr.bf16.mxu0 0
      %1338 = vmatpush1.bf16.msra.mxu0 %v1279
      %1339 = vmatprep.subr.bf16.mxu0 0
      %1340 = vmatpush1.bf16.msra.mxu0 %v1280
      %1341 = vmatprep.subr.bf16.mxu0 0
      %1342 = vmatpush1.bf16.msra.mxu0 %v1281
      %1343 = vmatprep.subr.bf16.mxu0 0
      %1344 = vmatpush1.bf16.msra.mxu0 %v1282
      %1345 = vmatprep.subr.bf16.mxu0 0
      %1346 = vmatpush1.bf16.msra.mxu0 %v1283
      %1347 = vmatprep.subr.bf16.mxu0 0
      %1348 = vmatpush1.bf16.msra.mxu0 %v1284
      %1349 = vmatprep.mubr.bf16.mxu0 %v1053
      %1350 = vmatmul.mubr.bf16.gmra.mrb[0].mxu0 %v1052
      %v1351 = vpop.f32.mrb[0].mxu0
      %v1352 = vadd.f32 0.0, %v1351
      %v1353 = vpop.f32.mrb[0].mxu0
      %v1354 = vpop.f32.mrb[0].mxu0
      %v1355 = vadd.f32 0.0, %v1354
      %v1356 = vpop.f32.mrb[0].mxu0
      %1357 = vmatprep.mubr.bf16.mxu0 %v1056
      %1358 = vmatmul.mubr.bf16.gmra.mrb[0].mxu0 %v1055
      %v1359 = vpop.f32.mrb[0].mxu0
      %v1360 = vadd.f32 0.0, %v1359
      %v1361 = vpop.f32.mrb[0].mxu0
      %v1362 = vpop.f32.mrb[0].mxu0
      %v1363 = vadd.f32 0.0, %v1362
      %v1364 = vpop.f32.mrb[0].mxu0
      %1365 = vmatprep.mubr.bf16.mxu0 %v1059
      %1366 = vmatmul.mubr.bf16.gmra.mrb[0].mxu0 %v1058
      %v1367 = vpop.f32.mrb[0].mxu0
      %v1368 = vadd.f32 0.0, %v1367
      %v1369 = vpop.f32.mrb[0].mxu0
      %v1370 = vpop.f32.mrb[0].mxu0
      %v1371 = vadd.f32 0.0, %v1370
      %v1372 = vpop.f32.mrb[0].mxu0
      %1373 = vmatprep.mubr.bf16.mxu0 %v1062
      %1374 = vmatmul.mubr.bf16.gmra.mrb[0].mxu0 %v1061
      %v1375 = vpop.f32.mrb[0].mxu0
      %v1376 = vadd.f32 0.0, %v1375
      %v1377 = vpop.f32.mrb[0].mxu0
      %v1378 = vpop.f32.mrb[0].mxu0
      %v1379 = vadd.f32 0.0, %v1378
      %v1380 = vpop.f32.mrb[0].mxu0
      %1381 = vmatprep.mubr.bf16.mxu0 %v1065
      %1382 = vmatmul.mubr.bf16.gmra.mrb[0].mxu0 %v1064
      %v1383 = vpop.f32.mrb[0].mxu0
      %v1384 = vadd.f32 0.0, %v1383
      %v1385 = vpop.f32.mrb[0].mxu0
      %v1386 = vpop.f32.mrb[0].mxu0
      %v1387 = vadd.f32 0.0, %v1386
      %v1388 = vpop.f32.mrb[0].mxu0
      %1389 = vmatprep.mubr.bf16.mxu0 %v1068
      %1390 = vmatmul.mubr.bf16.gmra.mrb[0].mxu0 %v1067
      %v1391 = vpop.f32.mrb[0].mxu0
      %v1392 = vadd.f32 0.0, %v1391
      %v1393 = vpop.f32.mrb[0].mxu0
      %v1394 = vpop.f32.mrb[0].mxu0
      %v1395 = vadd.f32 0.0, %v1394
      %v1396 = vpop.f32.mrb[0].mxu0
      %1397 = vmatprep.mubr.bf16.mxu0 %v1071
      %1398 = vmatmul.mubr.bf16.gmra.mrb[0].mxu0 %v1070
      %v1399 = vpop.f32.mrb[0].mxu0
      %v1400 = vadd.f32 0.0, %v1399
      %v1401 = vpop.f32.mrb[0].mxu0
      %v1402 = vpop.f32.mrb[0].mxu0
      %v1403 = vadd.f32 0.0, %v1402
      %v1404 = vpop.f32.mrb[0].mxu0
      %1405 = vmatprep.mubr.bf16.mxu0 %v1122
      %1406 = vmatmul.mubr.bf16.gmra.mrb[0].mxu0 %v1121
      %v1407 = vpop.f32.mrb[0].mxu0
      %v1408 = vadd.f32 0.0, %v1407
      %v1409 = vpop.f32.mrb[0].mxu0
      %v1410 = vpop.f32.mrb[0].mxu0
      %v1411 = vadd.f32 0.0, %v1410
      %v1412 = vpop.f32.mrb[0].mxu0
      %1413 = vdwg.mxu0
      %1414 = vmatprep.subr.bf16.mxu0 0
      %1415 = vmatpush1.bf16.msra.mxu0 %v1285
      %1416 = vmatprep.subr.bf16.mxu0 0
      %1417 = vmatpush1.bf16.msra.mxu0 %v1286
      %1418 = vmatprep.subr.bf16.mxu0 0
      %1419 = vmatpush1.bf16.msra.mxu0 %v1287
      %1420 = vmatprep.subr.bf16.mxu0 0
      %1421 = vmatpush1.bf16.msra.mxu0 %v1288
      %1422 = vmatprep.subr.bf16.mxu0 0
      %1423 = vmatpush1.bf16.msra.mxu0 %v1289
      %1424 = vmatprep.subr.bf16.mxu0 0
      %1425 = vmatpush1.bf16.msra.mxu0 %v1290
      %1426 = vmatprep.subr.bf16.mxu0 0
      %1427 = vmatpush1.bf16.msra.mxu0 %v1291
      %1428 = vmatprep.subr.bf16.mxu0 0
      %1429 = vmatpush1.bf16.msra.mxu0 %v1292
      %1430 = vmatprep.subr.bf16.mxu0 0
      %1431 = vmatpush1.bf16.msra.mxu0 0
      %1432 = vmatprep.subr.bf16.mxu0 0
      %1433 = vmatpush1.bf16.msra.mxu0 0
      %1434 = vmatprep.subr.bf16.mxu0 0
      %1435 = vmatpush1.bf16.msra.mxu0 0
      %1436 = vmatprep.subr.bf16.mxu0 0
      %1437 = vmatpush1.bf16.msra.mxu0 0
      %1438 = vmatprep.subr.bf16.mxu0 0
      %1439 = vmatpush1.bf16.msra.mxu0 0
      %1440 = vmatprep.subr.bf16.mxu0 0
      %1441 = vmatpush1.bf16.msra.mxu0 0
      %1442 = vmatprep.subr.bf16.mxu0 0
      %1443 = vmatpush1.bf16.msra.mxu0 0
      %1444 = vmatprep.subr.bf16.mxu0 0
      %1445 = vmatpush1.bf16.msra.mxu0 0
      %1446 = vmatprep.mubr.bf16.mxu0 0
      %1447 = vmatmul.mubr.bf16.gmra.mrb[0].mxu0 %v1054
      %v1448 = vpop.f32.mrb[0].mxu0
      %v1449 = vadd.f32 %v1352, %v1448
      %v1450 = vpop.f32.mrb[0].mxu0
      %v1451 = vpop.f32.mrb[0].mxu0
      %v1452 = vadd.f32 %v1355, %v1451
      %v1453 = vpop.f32.mrb[0].mxu0
      %1454 = vmatprep.mubr.bf16.mxu0 0
      %1455 = vmatmul.mubr.bf16.gmra.mrb[0].mxu0 %v1057
      %v1456 = vpop.f32.mrb[0].mxu0
      %v1457 = vadd.f32 %v1360, %v1456
      %v1458 = vpop.f32.mrb[0].mxu0
      %v1459 = vpop.f32.mrb[0].mxu0
      %v1460 = vadd.f32 %v1363, %v1459
      %v1461 = vpop.f32.mrb[0].mxu0
      %1462 = vmatprep.mubr.bf16.mxu0 0
      %1463 = vmatmul.mubr.bf16.gmra.mrb[0].mxu0 %v1060
      %v1464 = vpop.f32.mrb[0].mxu0
      %v1465 = vadd.f32 %v1368, %v1464
      %v1466 = vpop.f32.mrb[0].mxu0
      %v1467 = vpop.f32.mrb[0].mxu0
      %v1468 = vadd.f32 %v1371, %v1467
      %v1469 = vpop.f32.mrb[0].mxu0
      %1470 = vmatprep.mubr.bf16.mxu0 0
      %1471 = vmatmul.mubr.bf16.gmra.mrb[0].mxu0 %v1063
      %v1472 = vpop.f32.mrb[0].mxu0
      %v1473 = vadd.f32 %v1376, %v1472
      %v1474 = vpop.f32.mrb[0].mxu0
      %v1475 = vpop.f32.mrb[0].mxu0
      %v1476 = vadd.f32 %v1379, %v1475
      %v1477 = vpop.f32.mrb[0].mxu0
      %1478 = vmatprep.mubr.bf16.mxu0 0
      %1479 = vmatmul.mubr.bf16.gmra.mrb[0].mxu0 %v1066
      %v1480 = vpop.f32.mrb[0].mxu0
      %v1481 = vadd.f32 %v1384, %v1480
      %v1482 = vpop.f32.mrb[0].mxu0
      %v1483 = vpop.f32.mrb[0].mxu0
      %v1484 = vadd.f32 %v1387, %v1483
      %v1485 = vpop.f32.mrb[0].mxu0
      %1486 = vmatprep.mubr.bf16.mxu0 0
      %1487 = vmatmul.mubr.bf16.gmra.mrb[0].mxu0 %v1069
      %v1488 = vpop.f32.mrb[0].mxu0
      %v1489 = vadd.f32 %v1392, %v1488
      %v1490 = vpop.f32.mrb[0].mxu0
      %v1491 = vpop.f32.mrb[0].mxu0
      %v1492 = vadd.f32 %v1395, %v1491
      %v1493 = vpop.f32.mrb[0].mxu0
      %1494 = vmatprep.mubr.bf16.mxu0 0
      %1495 = vmatmul.mubr.bf16.gmra.mrb[0].mxu0 %v1072
      %v1496 = vpop.f32.mrb[0].mxu0
      %v1497 = vadd.f32 %v1400, %v1496
      %v1498 = vpop.f32.mrb[0].mxu0
      %v1499 = vpop.f32.mrb[0].mxu0
      %v1500 = vadd.f32 %v1403, %v1499
      %v1501 = vpop.f32.mrb[0].mxu0
      %1502 = vmatprep.mubr.bf16.mxu0 0
      %1503 = vmatmul.mubr.bf16.gmra.mrb[0].mxu0 %v1123
      %v1504 = vpop.f32.mrb[0].mxu0
      %v1505 = vadd.f32 %v1408, %v1504
      %v1506 = vpop.f32.mrb[0].mxu0
      %v1507 = vpop.f32.mrb[0].mxu0
      %v1508 = vadd.f32 %v1411, %v1507
      %v1509 = vpop.f32.mrb[0].mxu0
      %1510 = vdwg.mxu0
      %v1559 = vunpack.c.l.b16 %v1073
      %v1560 = vunpack.c.l.b16 %v1074
      %v1561 = vunpack.c.l.b16 %v1075
      %v1562 = vunpack.c.l.b16 %v1076
      %v1563 = vunpack.c.l.b16 %v1077
      %v1564 = vunpack.c.l.b16 %v1078
      %v1565 = vunpack.c.l.b16 %v1079
      %v1566 = vunpack.c.l.b16 %v1080
      %v1567 = vunpack.c.l.b16 %v1081
      %v1568 = vunpack.c.l.b16 %v1082
      %v1569 = vunpack.c.l.b16 %v1083
      %v1570 = vunpack.c.l.b16 %v1084
      %v1571 = vunpack.c.l.b16 %v1085
      %v1572 = vunpack.c.l.b16 %v1086
      %v1573 = vunpack.c.l.b16 %v1087
      %v1574 = vunpack.c.l.b16 %v1088
      %v1575 = vunpack.c.l.b16 %v1089
      %v1576 = vunpack.c.l.b16 %v1090
      %v1577 = vunpack.c.l.b16 %v1091
      %v1578 = vunpack.c.l.b16 %v1092
      %v1579 = vunpack.c.l.b16 %v1093
      %v1580 = vunpack.c.l.b16 %v1094
      %v1581 = vunpack.c.l.b16 %v1095
      %v1582 = vunpack.c.l.b16 %v1096
      %v1583 = vunpack.c.l.b16 %v1097
      %v1584 = vunpack.c.l.b16 %v1098
      %v1585 = vunpack.c.l.b16 %v1099
      %v1586 = vunpack.c.l.b16 %v1100
      %v1587 = vunpack.c.l.b16 %v1101
      %v1588 = vunpack.c.l.b16 %v1102
      %v1589 = vunpack.c.l.b16 %v1103
      %v1590 = vunpack.c.l.b16 %v1104
      %v1591 = vunpack.c.l.b16 %v1105
      %v1592 = vunpack.c.l.b16 %v1106
      %v1593 = vunpack.c.l.b16 %v1107
      %v1594 = vunpack.c.l.b16 %v1108
      %v1595 = vunpack.c.l.b16 %v1109
      %v1596 = vunpack.c.l.b16 %v1110
      %v1597 = vunpack.c.l.b16 %v1111
      %v1598 = vunpack.c.l.b16 %v1112
      %v1599 = vunpack.c.l.b16 %v1113
      %v1600 = vunpack.c.l.b16 %v1114
      %v1601 = vunpack.c.l.b16 %v1115
      %v1602 = vunpack.c.l.b16 %v1116
      %v1603 = vunpack.c.l.b16 %v1117
      %v1604 = vunpack.c.l.b16 %v1118
      %v1605 = vunpack.c.l.b16 %v1119
      %v1606 = vunpack.c.l.b16 %v1120
      %v1607 = vpack.c.b16 %v1560, %v1559
      %v1608 = vpack.c.b16 %v1562, %v1561
      %v1609 = vpack.c.b16 %v1564, %v1563
      %v1610 = vpack.c.b16 %v1566, %v1565
      %v1611 = vpack.c.b16 %v1568, %v1567
      %v1612 = vpack.c.b16 %v1570, %v1569
      %v1613 = vpack.c.b16 %v1572, %v1571
      %v1614 = vpack.c.b16 %v1574, %v1573
      %v1615 = vpack.c.b16 %v1576, %v1575
      %v1616 = vpack.c.b16 %v1578, %v1577
      %v1617 = vpack.c.b16 %v1580, %v1579
      %v1618 = vpack.c.b16 %v1582, %v1581
      %v1619 = vpack.c.b16 %v1584, %v1583
      %v1620 = vpack.c.b16 %v1586, %v1585
      %v1621 = vpack.c.b16 %v1588, %v1587
      %v1622 = vpack.c.b16 %v1590, %v1589
      %v1623 = vpack.c.b16 %v1592, %v1591
      %v1624 = vpack.c.b16 %v1594, %v1593
      %v1625 = vpack.c.b16 %v1596, %v1595
      %v1626 = vpack.c.b16 %v1598, %v1597
      %v1627 = vpack.c.b16 %v1600, %v1599
      %v1628 = vpack.c.b16 %v1602, %v1601
      %v1629 = vpack.c.b16 %v1604, %v1603
      %v1630 = vpack.c.b16 %v1606, %v1605
      %1655 = vmatprep.subr.bf16.mxu0 0
      %1656 = vmatpush1.bf16.msra.mxu0 %v1607
      %1657 = vmatprep.subr.bf16.mxu0 0
      %1658 = vmatpush1.bf16.msra.mxu0 %v1608
      %1659 = vmatprep.subr.bf16.mxu0 0
      %1660 = vmatpush1.bf16.msra.mxu0 %v1609
      %1661 = vmatprep.subr.bf16.mxu0 0
      %1662 = vmatpush1.bf16.msra.mxu0 %v1610
      %1663 = vmatprep.subr.bf16.mxu0 0
      %1664 = vmatpush1.bf16.msra.mxu0 %v1611
      %1665 = vmatprep.subr.bf16.mxu0 0
      %1666 = vmatpush1.bf16.msra.mxu0 %v1612
      %1667 = vmatprep.subr.bf16.mxu0 0
      %1668 = vmatpush1.bf16.msra.mxu0 %v1613
      %1669 = vmatprep.subr.bf16.mxu0 0
      %1670 = vmatpush1.bf16.msra.mxu0 %v1614
      %1671 = vmatprep.subr.bf16.mxu0 0
      %1672 = vmatpush1.bf16.msra.mxu0 %v1615
      %1673 = vmatprep.subr.bf16.mxu0 0
      %1674 = vmatpush1.bf16.msra.mxu0 %v1616
      %1675 = vmatprep.subr.bf16.mxu0 0
      %1676 = vmatpush1.bf16.msra.mxu0 %v1617
      %1677 = vmatprep.subr.bf16.mxu0 0
      %1678 = vmatpush1.bf16.msra.mxu0 %v1618
      %1679 = vmatprep.subr.bf16.mxu0 0
      %1680 = vmatpush1.bf16.msra.mxu0 %v1619
      %1681 = vmatprep.subr.bf16.mxu0 0
      %1682 = vmatpush1.bf16.msra.mxu0 %v1620
      %1683 = vmatprep.subr.bf16.mxu0 0
      %1684 = vmatpush1.bf16.msra.mxu0 %v1621
      %1685 = vmatprep.subr.bf16.mxu0 0
      %1686 = vmatpush1.bf16.msra.mxu0 %v1622
      %1687 = vmatprep.mubr.bf16.mxu0 %v1050
      %1688 = vmatmul.mubr.bf16.gmra.mrb[0].mxu0 %v1049
      %v1689 = vpop.f32.mrb[0].mxu0
      %v1690 = vadd.f32 %v1449, %v1689
      %v1691 = vpop.f32.mrb[0].mxu0
      %v1692 = vpop.f32.mrb[0].mxu0
      %v1693 = vadd.f32 %v1452, %v1692
      %v1694 = vpop.f32.mrb[0].mxu0
      %1695 = vmatprep.mubr.bf16.mxu0 %v1053
      %1696 = vmatmul.mubr.bf16.gmra.mrb[0].mxu0 %v1052
      %v1697 = vpop.f32.mrb[0].mxu0
      %v1698 = vadd.f32 %v1457, %v1697
      %v1699 = vpop.f32.mrb[0].mxu0
      %v1700 = vpop.f32.mrb[0].mxu0
      %v1701 = vadd.f32 %v1460, %v1700
      %v1702 = vpop.f32.mrb[0].mxu0
      %1703 = vmatprep.mubr.bf16.mxu0 %v1056
      %1704 = vmatmul.mubr.bf16.gmra.mrb[0].mxu0 %v1055
      %v1705 = vpop.f32.mrb[0].mxu0
      %v1706 = vadd.f32 %v1465, %v1705
      %v1707 = vpop.f32.mrb[0].mxu0
      %v1708 = vpop.f32.mrb[0].mxu0
      %v1709 = vadd.f32 %v1468, %v1708
      %v1710 = vpop.f32.mrb[0].mxu0
      %1711 = vmatprep.mubr.bf16.mxu0 %v1059
      %1712 = vmatmul.mubr.bf16.gmra.mrb[0].mxu0 %v1058
      %v1713 = vpop.f32.mrb[0].mxu0
      %v1714 = vadd.f32 %v1473, %v1713
      %v1715 = vpop.f32.mrb[0].mxu0
      %v1716 = vpop.f32.mrb[0].mxu0
      %v1717 = vadd.f32 %v1476, %v1716
      %v1718 = vpop.f32.mrb[0].mxu0
      %1719 = vmatprep.mubr.bf16.mxu0 %v1062
      %1720 = vmatmul.mubr.bf16.gmra.mrb[0].mxu0 %v1061
      %v1721 = vpop.f32.mrb[0].mxu0
      %v1722 = vadd.f32 %v1481, %v1721
      %v1723 = vpop.f32.mrb[0].mxu0
      %v1724 = vpop.f32.mrb[0].mxu0
      %v1725 = vadd.f32 %v1484, %v1724
      %v1726 = vpop.f32.mrb[0].mxu0
      %1727 = vmatprep.mubr.bf16.mxu0 %v1065
      %1728 = vmatmul.mubr.bf16.gmra.mrb[0].mxu0 %v1064
      %v1729 = vpop.f32.mrb[0].mxu0
      %v1730 = vadd.f32 %v1489, %v1729
      %v1731 = vpop.f32.mrb[0].mxu0
      %v1732 = vpop.f32.mrb[0].mxu0
      %v1733 = vadd.f32 %v1492, %v1732
      %v1734 = vpop.f32.mrb[0].mxu0
      %1735 = vmatprep.mubr.bf16.mxu0 %v1068
      %1736 = vmatmul.mubr.bf16.gmra.mrb[0].mxu0 %v1067
      %v1737 = vpop.f32.mrb[0].mxu0
      %v1738 = vadd.f32 %v1497, %v1737
      %v1739 = vpop.f32.mrb[0].mxu0
      %v1740 = vpop.f32.mrb[0].mxu0
      %v1741 = vadd.f32 %v1500, %v1740
      %v1742 = vpop.f32.mrb[0].mxu0
      %1743 = vmatprep.mubr.bf16.mxu0 %v1071
      %1744 = vmatmul.mubr.bf16.gmra.mrb[0].mxu0 %v1070
      %v1745 = vpop.f32.mrb[0].mxu0
      %v1746 = vadd.f32 %v1505, %v1745
      %v1747 = vpop.f32.mrb[0].mxu0
      %v1748 = vpop.f32.mrb[0].mxu0
      %v1749 = vadd.f32 %v1508, %v1748
      %v1750 = vpop.f32.mrb[0].mxu0
      %1751 = vdwg.mxu0
      %1752 = vmatprep.subr.bf16.mxu0 0
      %1753 = vmatpush1.bf16.msra.mxu0 %v1623
      %1754 = vmatprep.subr.bf16.mxu0 0
      %1755 = vmatpush1.bf16.msra.mxu0 %v1624
      %1756 = vmatprep.subr.bf16.mxu0 0
      %1757 = vmatpush1.bf16.msra.mxu0 %v1625
      %1758 = vmatprep.subr.bf16.mxu0 0
      %1759 = vmatpush1.bf16.msra.mxu0 %v1626
      %1760 = vmatprep.subr.bf16.mxu0 0
      %1761 = vmatpush1.bf16.msra.mxu0 %v1627
      %1762 = vmatprep.subr.bf16.mxu0 0
      %1763 = vmatpush1.bf16.msra.mxu0 %v1628
      %1764 = vmatprep.subr.bf16.mxu0 0
      %1765 = vmatpush1.bf16.msra.mxu0 %v1629
      %1766 = vmatprep.subr.bf16.mxu0 0
      %1767 = vmatpush1.bf16.msra.mxu0 %v1630
      %1768 = vmatprep.subr.bf16.mxu0 0
      %1769 = vmatpush1.bf16.msra.mxu0 0
      %1770 = vmatprep.subr.bf16.mxu0 0
      %1771 = vmatpush1.bf16.msra.mxu0 0
      %1772 = vmatprep.subr.bf16.mxu0 0
      %1773 = vmatpush1.bf16.msra.mxu0 0
      %1774 = vmatprep.subr.bf16.mxu0 0
      %1775 = vmatpush1.bf16.msra.mxu0 0
      %1776 = vmatprep.subr.bf16.mxu0 0
      %1777 = vmatpush1.bf16.msra.mxu0 0
      %1778 = vmatprep.subr.bf16.mxu0 0
      %1779 = vmatpush1.bf16.msra.mxu0 0
      %1780 = vmatprep.subr.bf16.mxu0 0
      %1781 = vmatpush1.bf16.msra.mxu0 0
      %1782 = vmatprep.subr.bf16.mxu0 0
      %1783 = vmatpush1.bf16.msra.mxu0 0
      %1784 = vmatprep.mubr.bf16.mxu0 0
      %1785 = vmatmul.mubr.bf16.gmra.mrb[0].mxu0 %v1051
      %v1786 = vpop.f32.mrb[0].mxu0
      %v1787 = vadd.f32 %v1690, %v1786
      %v1788 = vpop.f32.mrb[0].mxu0
      %v1789 = vpop.f32.mrb[0].mxu0
      %v1790 = vadd.f32 %v1693, %v1789
      %v1791 = vpop.f32.mrb[0].mxu0
      %1792 = vmatprep.mubr.bf16.mxu0 0
      %1793 = vmatmul.mubr.bf16.gmra.mrb[0].mxu0 %v1054
      %v1794 = vpop.f32.mrb[0].mxu0
      %v1795 = vadd.f32 %v1698, %v1794
      %v1796 = vpop.f32.mrb[0].mxu0
      %v1797 = vpop.f32.mrb[0].mxu0
      %v1798 = vadd.f32 %v1701, %v1797
      %v1799 = vpop.f32.mrb[0].mxu0
      %1800 = vmatprep.mubr.bf16.mxu0 0
      %1801 = vmatmul.mubr.bf16.gmra.mrb[0].mxu0 %v1057
      %v1802 = vpop.f32.mrb[0].mxu0
      %v1803 = vadd.f32 %v1706, %v1802
      %v1804 = vpop.f32.mrb[0].mxu0
      %v1805 = vpop.f32.mrb[0].mxu0
      %v1806 = vadd.f32 %v1709, %v1805
      %v1807 = vpop.f32.mrb[0].mxu0
      %1808 = vmatprep.mubr.bf16.mxu0 0
      %1809 = vmatmul.mubr.bf16.gmra.mrb[0].mxu0 %v1060
      %v1810 = vpop.f32.mrb[0].mxu0
      %v1811 = vadd.f32 %v1714, %v1810
      %v1812 = vpop.f32.mrb[0].mxu0
      %v1813 = vpop.f32.mrb[0].mxu0
      %v1814 = vadd.f32 %v1717, %v1813
      %v1815 = vpop.f32.mrb[0].mxu0
      %1816 = vmatprep.mubr.bf16.mxu0 0
      %1817 = vmatmul.mubr.bf16.gmra.mrb[0].mxu0 %v1063
      %v1818 = vpop.f32.mrb[0].mxu0
      %v1819 = vadd.f32 %v1722, %v1818
      %v1820 = vpop.f32.mrb[0].mxu0
      %v1821 = vpop.f32.mrb[0].mxu0
      %v1822 = vadd.f32 %v1725, %v1821
      %v1823 = vpop.f32.mrb[0].mxu0
      %1824 = vmatprep.mubr.bf16.mxu0 0
      %1825 = vmatmul.mubr.bf16.gmra.mrb[0].mxu0 %v1066
      %v1826 = vpop.f32.mrb[0].mxu0
      %v1827 = vadd.f32 %v1730, %v1826
      %v1828 = vpop.f32.mrb[0].mxu0
      %v1829 = vpop.f32.mrb[0].mxu0
      %v1830 = vadd.f32 %v1733, %v1829
      %v1831 = vpop.f32.mrb[0].mxu0
      %1832 = vmatprep.mubr.bf16.mxu0 0
      %1833 = vmatmul.mubr.bf16.gmra.mrb[0].mxu0 %v1069
      %v1834 = vpop.f32.mrb[0].mxu0
      %v1835 = vadd.f32 %v1738, %v1834
      %v1836 = vpop.f32.mrb[0].mxu0
      %v1837 = vpop.f32.mrb[0].mxu0
      %v1838 = vadd.f32 %v1741, %v1837
      %v1839 = vpop.f32.mrb[0].mxu0
      %1840 = vmatprep.mubr.bf16.mxu0 0
      %1841 = vmatmul.mubr.bf16.gmra.mrb[0].mxu0 %v1072
      %v1842 = vpop.f32.mrb[0].mxu0
      %v1843 = vadd.f32 %v1746, %v1842
      %v1844 = vpop.f32.mrb[0].mxu0
      %v1845 = vpop.f32.mrb[0].mxu0
      %v1846 = vadd.f32 %v1749, %v1845
      %v1847 = vpop.f32.mrb[0].mxu0
      %1848 = vdwg.mxu0
      %v1849 = vld [vmem:[#allocation2 + $0x30] sm:$0xff]
      %v1850 = vld [vmem:[#allocation2 + $0x38] sm:$0xff]
      %v1851 = vld [vmem:[#allocation2 + $0x40] sm:$0xff]
      %v1852 = vld [vmem:[#allocation2 + $0x48] sm:$0xff]
      %v1853 = vld [vmem:[#allocation2 + $0x50] sm:$0xff]
      %v1854 = vld [vmem:[#allocation2 + $0x58] sm:$0xff]
      %v1855 = vld [vmem:[#allocation2 + $0x60] sm:$0xff]
      %v1856 = vld [vmem:[#allocation2 + $0x68] sm:$0xff]
      %v1857 = vld [vmem:[#allocation2 + $0x70] sm:$0xff]
      %v1858 = vld [vmem:[#allocation2 + $0x78] sm:$0xff]
      %v1859 = vld [vmem:[#allocation2 + $0x80] sm:$0xff]
      %v1860 = vld [vmem:[#allocation2 + $0x88] sm:$0xff]
      %v1861 = vld [vmem:[#allocation2 + $0x90] sm:$0xff]
      %v1862 = vld [vmem:[#allocation2 + $0x98] sm:$0xff]
      %v1863 = vld [vmem:[#allocation2 + $0xa0] sm:$0xff]
      %v1864 = vld [vmem:[#allocation2 + $0xa8] sm:$0xff]
      %v1865 = vld [vmem:[#allocation2 + $0xb0] sm:$0xff]
      %v1866 = vld [vmem:[#allocation2 + $0xb8] sm:$0xff]
      %v1867 = vld [vmem:[#allocation2 + $0xc0] sm:$0xff]
      %v1868 = vld [vmem:[#allocation2 + $0xc8] sm:$0xff]
      %v1869 = vld [vmem:[#allocation2 + $0xd0] sm:$0xff]
      %v1870 = vld [vmem:[#allocation2 + $0xd8] sm:$0xff]
      %v1871 = vld [vmem:[#allocation2 + $0xe0] sm:$0xff]
      %v1872 = vld [vmem:[#allocation2 + $0xe8] sm:$0xff]
      %s1873 = scalar_lea.vmem %s5, 384
      %v1874 = vld [vmem:[%s1873] sm:$0xf]
      %v1875 = vld [vmem:[%s1873 + $0x4] sm:$0xf]
      %v1876 = vld [vmem:[%s1873 + $0x8] sm:$0xf]
      %v1877 = vld [vmem:[%s1873 + $0xc] sm:$0xf]
      %v1878 = vld [vmem:[%s1873 + $0x10] sm:$0xf]
      %v1879 = vld [vmem:[%s1873 + $0x14] sm:$0xf]
      %v1880 = vld [vmem:[%s1873 + $0x18] sm:$0xf]
      %v1881 = vld [vmem:[%s1873 + $0x1c] sm:$0xf]
      %v1882 = vld [vmem:[%s1873 + $0x20] sm:$0xf]
      %v1883 = vld [vmem:[%s1873 + $0x24] sm:$0xf]
      %v1884 = vld [vmem:[%s1873 + $0x28] sm:$0xf]
      %v1885 = vld [vmem:[%s1873 + $0x2c] sm:$0xf]
      %v1886 = vld [vmem:[%s1873 + $0x30] sm:$0xf]
      %v1887 = vld [vmem:[%s1873 + $0x34] sm:$0xf]
      %v1888 = vld [vmem:[%s1873 + $0x38] sm:$0xf]
      %v1889 = vld [vmem:[%s1873 + $0x3c] sm:$0xf]
      %v1890 = vld [vmem:[%s1873 + $0x40] sm:$0xf]
      %v1891 = vld [vmem:[%s1873 + $0x44] sm:$0xf]
      %v1892 = vld [vmem:[%s1873 + $0x48] sm:$0xf]
      %v1893 = vld [vmem:[%s1873 + $0x4c] sm:$0xf]
      %v1894 = vld [vmem:[%s1873 + $0x50] sm:$0xf]
      %v1895 = vld [vmem:[%s1873 + $0x54] sm:$0xf]
      %v1896 = vld [vmem:[%s1873 + $0x58] sm:$0xf]
      %v1897 = vld [vmem:[%s1873 + $0x5c] sm:$0xf]
      %v1898 = vld [vmem:[%s1873 + $0x60] sm:$0xf]
      %v1899 = vld [vmem:[%s1873 + $0x64] sm:$0xf]
      %v1900 = vld [vmem:[%s1873 + $0x68] sm:$0xf]
      %v1901 = vld [vmem:[%s1873 + $0x6c] sm:$0xf]
      %v1902 = vld [vmem:[%s1873 + $0x70] sm:$0xf]
      %v1903 = vld [vmem:[%s1873 + $0x74] sm:$0xf]
      %v1904 = vld [vmem:[%s1873 + $0x78] sm:$0xf]
      %v1905 = vld [vmem:[%s1873 + $0x7c] sm:$0xf]
      %v1906 = vld [vmem:[%s1873 + $0x80] sm:$0xf]
      %v1907 = vld [vmem:[%s1873 + $0x84] sm:$0xf]
      %v1908 = vld [vmem:[%s1873 + $0x88] sm:$0xf]
      %v1909 = vld [vmem:[%s1873 + $0x8c] sm:$0xf]
      %v1910 = vld [vmem:[%s1873 + $0x90] sm:$0xf]
      %v1911 = vld [vmem:[%s1873 + $0x94] sm:$0xf]
      %v1912 = vld [vmem:[%s1873 + $0x98] sm:$0xf]
      %v1913 = vld [vmem:[%s1873 + $0x9c] sm:$0xf]
      %v1914 = vld [vmem:[%s1873 + $0xa0] sm:$0xf]
      %v1915 = vld [vmem:[%s1873 + $0xa4] sm:$0xf]
      %v1916 = vld [vmem:[%s1873 + $0xa8] sm:$0xf]
      %v1917 = vld [vmem:[%s1873 + $0xac] sm:$0xf]
      %v1918 = vld [vmem:[%s1873 + $0xb0] sm:$0xf]
      %v1919 = vld [vmem:[%s1873 + $0xb4] sm:$0xf]
      %v1920 = vld [vmem:[%s1873 + $0xb8] sm:$0xf]
      %v1921 = vld [vmem:[%s1873 + $0xbc] sm:$0xf]
      %v1970 = vunpack.c.l.b16 %v1874
      %v1971 = vunpack.c.l.b16 %v1875
      %v1972 = vunpack.c.l.b16 %v1876
      %v1973 = vunpack.c.l.b16 %v1877
      %v1974 = vunpack.c.l.b16 %v1878
      %v1975 = vunpack.c.l.b16 %v1879
      %v1976 = vunpack.c.l.b16 %v1880
      %v1977 = vunpack.c.l.b16 %v1881
      %v1978 = vunpack.c.l.b16 %v1882
      %v1979 = vunpack.c.l.b16 %v1883
      %v1980 = vunpack.c.l.b16 %v1884
      %v1981 = vunpack.c.l.b16 %v1885
      %v1982 = vunpack.c.l.b16 %v1886
      %v1983 = vunpack.c.l.b16 %v1887
      %v1984 = vunpack.c.l.b16 %v1888
      %v1985 = vunpack.c.l.b16 %v1889
      %v1986 = vunpack.c.l.b16 %v1890
      %v1987 = vunpack.c.l.b16 %v1891
      %v1988 = vunpack.c.l.b16 %v1892
      %v1989 = vunpack.c.l.b16 %v1893
      %v1990 = vunpack.c.l.b16 %v1894
      %v1991 = vunpack.c.l.b16 %v1895
      %v1992 = vunpack.c.l.b16 %v1896
      %v1993 = vunpack.c.l.b16 %v1897
      %v1994 = vunpack.c.l.b16 %v1898
      %v1995 = vunpack.c.l.b16 %v1899
      %v1996 = vunpack.c.l.b16 %v1900
      %v1997 = vunpack.c.l.b16 %v1901
      %v1998 = vunpack.c.l.b16 %v1902
      %v1999 = vunpack.c.l.b16 %v1903
      %v2000 = vunpack.c.l.b16 %v1904
      %v2001 = vunpack.c.l.b16 %v1905
      %v2002 = vunpack.c.l.b16 %v1906
      %v2003 = vunpack.c.l.b16 %v1907
      %v2004 = vunpack.c.l.b16 %v1908
      %v2005 = vunpack.c.l.b16 %v1909
      %v2006 = vunpack.c.l.b16 %v1910
      %v2007 = vunpack.c.l.b16 %v1911
      %v2008 = vunpack.c.l.b16 %v1912
      %v2009 = vunpack.c.l.b16 %v1913
      %v2010 = vunpack.c.l.b16 %v1914
      %v2011 = vunpack.c.l.b16 %v1915
      %v2012 = vunpack.c.l.b16 %v1916
      %v2013 = vunpack.c.l.b16 %v1917
      %v2014 = vunpack.c.l.b16 %v1918
      %v2015 = vunpack.c.l.b16 %v1919
      %v2016 = vunpack.c.l.b16 %v1920
      %v2017 = vunpack.c.l.b16 %v1921
      %v2018 = vpack.c.b16 %v1971, %v1970
      %v2019 = vpack.c.b16 %v1973, %v1972
      %v2020 = vpack.c.b16 %v1975, %v1974
      %v2021 = vpack.c.b16 %v1977, %v1976
      %v2022 = vpack.c.b16 %v1979, %v1978
      %v2023 = vpack.c.b16 %v1981, %v1980
      %v2024 = vpack.c.b16 %v1983, %v1982
      %v2025 = vpack.c.b16 %v1985, %v1984
      %v2026 = vpack.c.b16 %v1987, %v1986
      %v2027 = vpack.c.b16 %v1989, %v1988
      %v2028 = vpack.c.b16 %v1991, %v1990
      %v2029 = vpack.c.b16 %v1993, %v1992
      %v2030 = vpack.c.b16 %v1995, %v1994
      %v2031 = vpack.c.b16 %v1997, %v1996
      %v2032 = vpack.c.b16 %v1999, %v1998
      %v2033 = vpack.c.b16 %v2001, %v2000
      %v2034 = vpack.c.b16 %v2003, %v2002
      %v2035 = vpack.c.b16 %v2005, %v2004
      %v2036 = vpack.c.b16 %v2007, %v2006
      %v2037 = vpack.c.b16 %v2009, %v2008
      %v2038 = vpack.c.b16 %v2011, %v2010
      %v2039 = vpack.c.b16 %v2013, %v2012
      %v2040 = vpack.c.b16 %v2015, %v2014
      %v2041 = vpack.c.b16 %v2017, %v2016
      %2066 = vmatprep.subr.bf16.mxu0 0
      %2067 = vmatpush1.bf16.msra.mxu0 %v2018
      %2068 = vmatprep.subr.bf16.mxu0 0
      %2069 = vmatpush1.bf16.msra.mxu0 %v2019
      %2070 = vmatprep.subr.bf16.mxu0 0
      %2071 = vmatpush1.bf16.msra.mxu0 %v2020
      %2072 = vmatprep.subr.bf16.mxu0 0
      %2073 = vmatpush1.bf16.msra.mxu0 %v2021
      %2074 = vmatprep.subr.bf16.mxu0 0
      %2075 = vmatpush1.bf16.msra.mxu0 %v2022
      %2076 = vmatprep.subr.bf16.mxu0 0
      %2077 = vmatpush1.bf16.msra.mxu0 %v2023
      %2078 = vmatprep.subr.bf16.mxu0 0
      %2079 = vmatpush1.bf16.msra.mxu0 %v2024
      %2080 = vmatprep.subr.bf16.mxu0 0
      %2081 = vmatpush1.bf16.msra.mxu0 %v2025
      %2082 = vmatprep.subr.bf16.mxu0 0
      %2083 = vmatpush1.bf16.msra.mxu0 %v2026
      %2084 = vmatprep.subr.bf16.mxu0 0
      %2085 = vmatpush1.bf16.msra.mxu0 %v2027
      %2086 = vmatprep.subr.bf16.mxu0 0
      %2087 = vmatpush1.bf16.msra.mxu0 %v2028
      %2088 = vmatprep.subr.bf16.mxu0 0
      %2089 = vmatpush1.bf16.msra.mxu0 %v2029
      %2090 = vmatprep.subr.bf16.mxu0 0
      %2091 = vmatpush1.bf16.msra.mxu0 %v2030
      %2092 = vmatprep.subr.bf16.mxu0 0
      %2093 = vmatpush1.bf16.msra.mxu0 %v2031
      %2094 = vmatprep.subr.bf16.mxu0 0
      %2095 = vmatpush1.bf16.msra.mxu0 %v2032
      %2096 = vmatprep.subr.bf16.mxu0 0
      %2097 = vmatpush1.bf16.msra.mxu0 %v2033
      %2098 = vmatprep.mubr.bf16.mxu0 %v1850
      %2099 = vmatmul.mubr.bf16.gmra.mrb[0].mxu0 %v1849
      %v2100 = vpop.f32.mrb[0].mxu0
      %v2101 = vadd.f32 0.0, %v2100
      %v2102 = vpop.f32.mrb[0].mxu0
      %v2103 = vpop.f32.mrb[0].mxu0
      %v2104 = vadd.f32 0.0, %v2103
      %v2105 = vpop.f32.mrb[0].mxu0
      %2106 = vmatprep.mubr.bf16.mxu0 %v1853
      %2107 = vmatmul.mubr.bf16.gmra.mrb[0].mxu0 %v1852
      %v2108 = vpop.f32.mrb[0].mxu0
      %v2109 = vadd.f32 0.0, %v2108
      %v2110 = vpop.f32.mrb[0].mxu0
      %v2111 = vpop.f32.mrb[0].mxu0
      %v2112 = vadd.f32 0.0, %v2111
      %v2113 = vpop.f32.mrb[0].mxu0
      %2114 = vmatprep.mubr.bf16.mxu0 %v1856
      %2115 = vmatmul.mubr.bf16.gmra.mrb[0].mxu0 %v1855
      %v2116 = vpop.f32.mrb[0].mxu0
      %v2117 = vadd.f32 0.0, %v2116
      %v2118 = vpop.f32.mrb[0].mxu0
      %v2119 = vpop.f32.mrb[0].mxu0
      %v2120 = vadd.f32 0.0, %v2119
      %v2121 = vpop.f32.mrb[0].mxu0
      %2122 = vmatprep.mubr.bf16.mxu0 %v1859
      %2123 = vmatmul.mubr.bf16.gmra.mrb[0].mxu0 %v1858
      %v2124 = vpop.f32.mrb[0].mxu0
      %v2125 = vadd.f32 0.0, %v2124
      %v2126 = vpop.f32.mrb[0].mxu0
      %v2127 = vpop.f32.mrb[0].mxu0
      %v2128 = vadd.f32 0.0, %v2127
      %v2129 = vpop.f32.mrb[0].mxu0
      %2130 = vmatprep.mubr.bf16.mxu0 %v1862
      %2131 = vmatmul.mubr.bf16.gmra.mrb[0].mxu0 %v1861
      %v2132 = vpop.f32.mrb[0].mxu0
      %v2133 = vadd.f32 0.0, %v2132
      %v2134 = vpop.f32.mrb[0].mxu0
      %v2135 = vpop.f32.mrb[0].mxu0
      %v2136 = vadd.f32 0.0, %v2135
      %v2137 = vpop.f32.mrb[0].mxu0
      %2138 = vmatprep.mubr.bf16.mxu0 %v1865
      %2139 = vmatmul.mubr.bf16.gmra.mrb[0].mxu0 %v1864
      %v2140 = vpop.f32.mrb[0].mxu0
      %v2141 = vadd.f32 0.0, %v2140
      %v2142 = vpop.f32.mrb[0].mxu0
      %v2143 = vpop.f32.mrb[0].mxu0
      %v2144 = vadd.f32 0.0, %v2143
      %v2145 = vpop.f32.mrb[0].mxu0
      %2146 = vmatprep.mubr.bf16.mxu0 %v1868
      %2147 = vmatmul.mubr.bf16.gmra.mrb[0].mxu0 %v1867
      %v2148 = vpop.f32.mrb[0].mxu0
      %v2149 = vadd.f32 0.0, %v2148
      %v2150 = vpop.f32.mrb[0].mxu0
      %v2151 = vpop.f32.mrb[0].mxu0
      %v2152 = vadd.f32 0.0, %v2151
      %v2153 = vpop.f32.mrb[0].mxu0
      %2154 = vmatprep.mubr.bf16.mxu0 %v1871
      %2155 = vmatmul.mubr.bf16.gmra.mrb[0].mxu0 %v1870
      %v2156 = vpop.f32.mrb[0].mxu0
      %v2157 = vadd.f32 0.0, %v2156
      %v2158 = vpop.f32.mrb[0].mxu0
      %v2159 = vpop.f32.mrb[0].mxu0
      %v2160 = vadd.f32 0.0, %v2159
      %v2161 = vpop.f32.mrb[0].mxu0
      %2162 = vdwg.mxu0
      %2163 = vmatprep.subr.bf16.mxu0 0
      %2164 = vmatpush1.bf16.msra.mxu0 %v2034
      %2165 = vmatprep.subr.bf16.mxu0 0
      %2166 = vmatpush1.bf16.msra.mxu0 %v2035
      %2167 = vmatprep.subr.bf16.mxu0 0
      %2168 = vmatpush1.bf16.msra.mxu0 %v2036
      %2169 = vmatprep.subr.bf16.mxu0 0
      %2170 = vmatpush1.bf16.msra.mxu0 %v2037
      %2171 = vmatprep.subr.bf16.mxu0 0
      %2172 = vmatpush1.bf16.msra.mxu0 %v2038
      %2173 = vmatprep.subr.bf16.mxu0 0
      %2174 = vmatpush1.bf16.msra.mxu0 %v2039
      %2175 = vmatprep.subr.bf16.mxu0 0
      %2176 = vmatpush1.bf16.msra.mxu0 %v2040
      %2177 = vmatprep.subr.bf16.mxu0 0
      %2178 = vmatpush1.bf16.msra.mxu0 %v2041
      %2179 = vmatprep.subr.bf16.mxu0 0
      %2180 = vmatpush1.bf16.msra.mxu0 0
      %2181 = vmatprep.subr.bf16.mxu0 0
      %2182 = vmatpush1.bf16.msra.mxu0 0
      %2183 = vmatprep.subr.bf16.mxu0 0
      %2184 = vmatpush1.bf16.msra.mxu0 0
      %2185 = vmatprep.subr.bf16.mxu0 0
      %2186 = vmatpush1.bf16.msra.mxu0 0
      %2187 = vmatprep.subr.bf16.mxu0 0
      %2188 = vmatpush1.bf16.msra.mxu0 0
      %2189 = vmatprep.subr.bf16.mxu0 0
      %2190 = vmatpush1.bf16.msra.mxu0 0
      %2191 = vmatprep.subr.bf16.mxu0 0
      %2192 = vmatpush1.bf16.msra.mxu0 0
      %2193 = vmatprep.subr.bf16.mxu0 0
      %2194 = vmatpush1.bf16.msra.mxu0 0
      %2195 = vmatprep.mubr.bf16.mxu0 0
      %2196 = vmatmul.mubr.bf16.gmra.mrb[0].mxu0 %v1851
      %v2197 = vpop.f32.mrb[0].mxu0
      %v2198 = vadd.f32 %v2101, %v2197
      %v2199 = vpop.f32.mrb[0].mxu0
      %v2200 = vpop.f32.mrb[0].mxu0
      %v2201 = vadd.f32 %v2104, %v2200
      %v2202 = vpop.f32.mrb[0].mxu0
      %2203 = vmatprep.mubr.bf16.mxu0 0
      %2204 = vmatmul.mubr.bf16.gmra.mrb[0].mxu0 %v1854
      %v2205 = vpop.f32.mrb[0].mxu0
      %v2206 = vadd.f32 %v2109, %v2205
      %v2207 = vpop.f32.mrb[0].mxu0
      %v2208 = vpop.f32.mrb[0].mxu0
      %v2209 = vadd.f32 %v2112, %v2208
      %v2210 = vpop.f32.mrb[0].mxu0
      %2211 = vmatprep.mubr.bf16.mxu0 0
      %2212 = vmatmul.mubr.bf16.gmra.mrb[0].mxu0 %v1857
      %v2213 = vpop.f32.mrb[0].mxu0
      %v2214 = vadd.f32 %v2117, %v2213
      %v2215 = vpop.f32.mrb[0].mxu0
      %v2216 = vpop.f32.mrb[0].mxu0
      %v2217 = vadd.f32 %v2120, %v2216
      %v2218 = vpop.f32.mrb[0].mxu0
      %2219 = vmatprep.mubr.bf16.mxu0 0
      %2220 = vmatmul.mubr.bf16.gmra.mrb[0].mxu0 %v1860
      %v2221 = vpop.f32.mrb[0].mxu0
      %v2222 = vadd.f32 %v2125, %v2221
      %v2223 = vpop.f32.mrb[0].mxu0
      %v2224 = vpop.f32.mrb[0].mxu0
      %v2225 = vadd.f32 %v2128, %v2224
      %v2226 = vpop.f32.mrb[0].mxu0
      %2227 = vmatprep.mubr.bf16.mxu0 0
      %2228 = vmatmul.mubr.bf16.gmra.mrb[0].mxu0 %v1863
      %v2229 = vpop.f32.mrb[0].mxu0
      %v2230 = vadd.f32 %v2133, %v2229
      %v2231 = vpop.f32.mrb[0].mxu0
      %v2232 = vpop.f32.mrb[0].mxu0
      %v2233 = vadd.f32 %v2136, %v2232
      %v2234 = vpop.f32.mrb[0].mxu0
      %2235 = vmatprep.mubr.bf16.mxu0 0
      %2236 = vmatmul.mubr.bf16.gmra.mrb[0].mxu0 %v1866
      %v2237 = vpop.f32.mrb[0].mxu0
      %v2238 = vadd.f32 %v2141, %v2237
      %v2239 = vpop.f32.mrb[0].mxu0
      %v2240 = vpop.f32.mrb[0].mxu0
      %v2241 = vadd.f32 %v2144, %v2240
      %v2242 = vpop.f32.mrb[0].mxu0
      %2243 = vmatprep.mubr.bf16.mxu0 0
      %2244 = vmatmul.mubr.bf16.gmra.mrb[0].mxu0 %v1869
      %v2245 = vpop.f32.mrb[0].mxu0
      %v2246 = vadd.f32 %v2149, %v2245
      %v2247 = vpop.f32.mrb[0].mxu0
      %v2248 = vpop.f32.mrb[0].mxu0
      %v2249 = vadd.f32 %v2152, %v2248
      %v2250 = vpop.f32.mrb[0].mxu0
      %2251 = vmatprep.mubr.bf16.mxu0 0
      %2252 = vmatmul.mubr.bf16.gmra.mrb[0].mxu0 %v1872
      %v2253 = vpop.f32.mrb[0].mxu0
      %v2254 = vadd.f32 %v2157, %v2253
      %v2255 = vpop.f32.mrb[0].mxu0
      %v2256 = vpop.f32.mrb[0].mxu0
      %v2257 = vadd.f32 %v2160, %v2256
      %v2258 = vpop.f32.mrb[0].mxu0
      %2259 = vdwg.mxu0
      %v2260 = vadd.f32 %v1787, %v2198
      %v2261 = vadd.f32 %v1790, %v2201
      %v2262 = vadd.f32 %v1795, %v2206
      %v2263 = vadd.f32 %v1798, %v2209
      %v2264 = vadd.f32 %v1803, %v2214
      %v2265 = vadd.f32 %v1806, %v2217
      %v2266 = vadd.f32 %v1811, %v2222
      %v2267 = vadd.f32 %v1814, %v2225
      %v2268 = vadd.f32 %v1819, %v2230
      %v2269 = vadd.f32 %v1822, %v2233
      %v2270 = vadd.f32 %v1827, %v2238
      %v2271 = vadd.f32 %v1830, %v2241
      %v2272 = vadd.f32 %v1835, %v2246
      %v2273 = vadd.f32 %v1838, %v2249
      %v2274 = vadd.f32 %v1843, %v2254
      %v2275 = vadd.f32 %v1846, %v2257
      %v2276 = vld [vmem:[%s6] sm:$0x1]
      %v2278 = vlaneseq
      %v2279 = vshrl.u32 %v2278, 7
      %v2280 = vsub.s32 0, %v2279
      %v2281 = vrot.slane %v2276, %v2280
      %v2283 = vadd.f32 %v2260, %v2281
      %v2284 = vadd.f32 %v2261, %v2281
      %v2285 = vadd.f32 %v2262, %v2281
      %v2286 = vadd.f32 %v2263, %v2281
      %v2287 = vadd.f32 %v2264, %v2281
      %v2288 = vadd.f32 %v2265, %v2281
      %v2289 = vadd.f32 %v2266, %v2281
      %v2290 = vadd.f32 %v2267, %v2281
      %v2291 = vadd.f32 %v2268, %v2281
      %v2292 = vadd.f32 %v2269, %v2281
      %v2293 = vadd.f32 %v2270, %v2281
      %v2294 = vadd.f32 %v2271, %v2281
      %v2295 = vadd.f32 %v2272, %v2281
      %v2296 = vadd.f32 %v2273, %v2281
      %v2297 = vadd.f32 %v2274, %v2281
      %v2298 = vadd.f32 %v2275, %v2281
      %vm2299 = vcmp.gt.f32.partialorder %v2283, 0.0
      %vm2300 = vcmp.gt.f32.partialorder %v2284, 0.0
      %vm2301 = vcmp.gt.f32.partialorder %v2285, 0.0
      %vm2302 = vcmp.gt.f32.partialorder %v2286, 0.0
      %vm2303 = vcmp.gt.f32.partialorder %v2287, 0.0
      %vm2304 = vcmp.gt.f32.partialorder %v2288, 0.0
      %vm2305 = vcmp.gt.f32.partialorder %v2289, 0.0
      %vm2306 = vcmp.gt.f32.partialorder %v2290, 0.0
      %vm2307 = vcmp.gt.f32.partialorder %v2291, 0.0
      %vm2308 = vcmp.gt.f32.partialorder %v2292, 0.0
      %vm2309 = vcmp.gt.f32.partialorder %v2293, 0.0
      %vm2310 = vcmp.gt.f32.partialorder %v2294, 0.0
      %vm2311 = vcmp.gt.f32.partialorder %v2295, 0.0
      %vm2312 = vcmp.gt.f32.partialorder %v2296, 0.0
      %vm2313 = vcmp.gt.f32.partialorder %v2297, 0.0
      %vm2314 = vcmp.gt.f32.partialorder %v2298, 0.0
      %v2315 = vmul.f32 %v2283, 0.1
      %v2316 = vmul.f32 %v2284, 0.1
      %v2317 = vmul.f32 %v2285, 0.1
      %v2318 = vmul.f32 %v2286, 0.1
      %v2319 = vmul.f32 %v2287, 0.1
      %v2320 = vmul.f32 %v2288, 0.1
      %v2321 = vmul.f32 %v2289, 0.1
      %v2322 = vmul.f32 %v2290, 0.1
      %v2323 = vmul.f32 %v2291, 0.1
      %v2324 = vmul.f32 %v2292, 0.1
      %v2325 = vmul.f32 %v2293, 0.1
      %v2326 = vmul.f32 %v2294, 0.1
      %v2327 = vmul.f32 %v2295, 0.1
      %v2328 = vmul.f32 %v2296, 0.1
      %v2329 = vmul.f32 %v2297, 0.1
      %v2330 = vmul.f32 %v2298, 0.1
      %v2331 = vsel %vm2299, %v2283, %v2315
      %v2332 = vsel %vm2300, %v2284, %v2316
      %v2333 = vsel %vm2301, %v2285, %v2317
      %v2334 = vsel %vm2302, %v2286, %v2318
      %v2335 = vsel %vm2303, %v2287, %v2319
      %v2336 = vsel %vm2304, %v2288, %v2320
      %v2337 = vsel %vm2305, %v2289, %v2321
      %v2338 = vsel %vm2306, %v2290, %v2322
      %v2339 = vsel %vm2307, %v2291, %v2323
      %v2340 = vsel %vm2308, %v2292, %v2324
      %v2341 = vsel %vm2309, %v2293, %v2325
      %v2342 = vsel %vm2310, %v2294, %v2326
      %v2343 = vsel %vm2311, %v2295, %v2327
      %v2344 = vsel %vm2312, %v2296, %v2328
      %v2345 = vsel %vm2313, %v2297, %v2329
      %v2346 = vsel %vm2314, %v2298, %v2330
      %v2347 = vld [vmem:[%s400] sm:$0xf]
      %v2348 = vld [vmem:[%s400 + $0x4] sm:$0xf]
      %v2349 = vld [vmem:[%s400 + $0x8] sm:$0xf]
      %v2350 = vld [vmem:[%s400 + $0xc] sm:$0xf]
      %v2351 = vld [vmem:[%s400 + $0x10] sm:$0xf]
      %v2352 = vld [vmem:[%s400 + $0x14] sm:$0xf]
      %v2353 = vld [vmem:[%s400 + $0x18] sm:$0xf]
      %v2354 = vld [vmem:[%s400 + $0x1c] sm:$0xf]
      %v2355 = vld [vmem:[%s400 + $0x20] sm:$0xf]
      %v2356 = vld [vmem:[%s400 + $0x24] sm:$0xf]
      %v2357 = vld [vmem:[%s400 + $0x28] sm:$0xf]
      %v2358 = vld [vmem:[%s400 + $0x2c] sm:$0xf]
      %v2359 = vld [vmem:[%s400 + $0x30] sm:$0xf]
      %v2360 = vld [vmem:[%s400 + $0x34] sm:$0xf]
      %v2361 = vld [vmem:[%s400 + $0x38] sm:$0xf]
      %v2362 = vld [vmem:[%s400 + $0x3c] sm:$0xf]
      %v2363 = vunpack.c.l.bf16 %v2347
      %v2364 = vunpack.c.l.bf16 %v2348
      %v2365 = vunpack.c.l.bf16 %v2349
      %v2366 = vunpack.c.l.bf16 %v2350
      %v2367 = vunpack.c.l.bf16 %v2351
      %v2368 = vunpack.c.l.bf16 %v2352
      %v2369 = vunpack.c.l.bf16 %v2353
      %v2370 = vunpack.c.l.bf16 %v2354
      %v2371 = vunpack.c.l.bf16 %v2355
      %v2372 = vunpack.c.l.bf16 %v2356
      %v2373 = vunpack.c.l.bf16 %v2357
      %v2374 = vunpack.c.l.bf16 %v2358
      %v2375 = vunpack.c.l.bf16 %v2359
      %v2376 = vunpack.c.l.bf16 %v2360
      %v2377 = vunpack.c.l.bf16 %v2361
      %v2378 = vunpack.c.l.bf16 %v2362
      %v2379 = vadd.f32 %v2331, %v2363
      %v2380 = vadd.f32 %v2332, %v2364
      %v2381 = vadd.f32 %v2333, %v2365
      %v2382 = vadd.f32 %v2334, %v2366
      %v2383 = vadd.f32 %v2335, %v2367
      %v2384 = vadd.f32 %v2336, %v2368
      %v2385 = vadd.f32 %v2337, %v2369
      %v2386 = vadd.f32 %v2338, %v2370
      %v2387 = vadd.f32 %v2339, %v2371
      %v2388 = vadd.f32 %v2340, %v2372
      %v2389 = vadd.f32 %v2341, %v2373
      %v2390 = vadd.f32 %v2342, %v2374
      %v2391 = vadd.f32 %v2343, %v2375
      %v2392 = vadd.f32 %v2344, %v2376
      %v2393 = vadd.f32 %v2345, %v2377
      %v2394 = vadd.f32 %v2346, %v2378
      %v2395 = vpack.c.bf16 %v2380, %v2379
      %v2396 = vpack.c.bf16 %v2382, %v2381
      %v2397 = vpack.c.bf16 %v2384, %v2383
      %v2398 = vpack.c.bf16 %v2386, %v2385
      %v2399 = vpack.c.bf16 %v2388, %v2387
      %v2400 = vpack.c.bf16 %v2390, %v2389
      %v2401 = vpack.c.bf16 %v2392, %v2391
      %v2402 = vpack.c.bf16 %v2394, %v2393
      %v2411 = vunpack.c.l.b16 %v2395
      %v2412 = vunpack.c.h.b16 %v2395
      %v2413 = vunpack.c.l.b16 %v2396
      %v2414 = vunpack.c.h.b16 %v2396
      %v2415 = vunpack.c.l.b16 %v2397
      %v2416 = vunpack.c.h.b16 %v2397
      %v2417 = vunpack.c.l.b16 %v2398
      %v2418 = vunpack.c.h.b16 %v2398
      %v2419 = vunpack.c.l.b16 %v2399
      %v2420 = vunpack.c.h.b16 %v2399
      %v2421 = vunpack.c.l.b16 %v2400
      %v2422 = vunpack.c.h.b16 %v2400
      %v2423 = vunpack.c.l.b16 %v2401
      %v2424 = vunpack.c.h.b16 %v2401
      %v2425 = vunpack.c.l.b16 %v2402
      %v2426 = vunpack.c.h.b16 %v2402
      %v2427 = vpack.c.b16 %v2411, %v2411
      %v2428 = vpack.c.b16 %v2412, %v2412
      %v2429 = vpack.c.b16 %v2413, %v2413
      %v2430 = vpack.c.b16 %v2414, %v2414
      %v2431 = vpack.c.b16 %v2415, %v2415
      %v2432 = vpack.c.b16 %v2416, %v2416
      %v2433 = vpack.c.b16 %v2417, %v2417
      %v2434 = vpack.c.b16 %v2418, %v2418
      %v2435 = vpack.c.b16 %v2419, %v2419
      %v2436 = vpack.c.b16 %v2420, %v2420
      %v2437 = vpack.c.b16 %v2421, %v2421
      %v2438 = vpack.c.b16 %v2422, %v2422
      %v2439 = vpack.c.b16 %v2423, %v2423
      %v2440 = vpack.c.b16 %v2424, %v2424
      %v2441 = vpack.c.b16 %v2425, %v2425
      %v2442 = vpack.c.b16 %v2426, %v2426
      %2459 = vst [vmem:[%s445] sm:$0xf] %v2427
      %2460 = vst [vmem:[%s445 + $0x4] sm:$0xf] %v2428
      %2461 = vst [vmem:[%s445 + $0x8] sm:$0xf] %v2429
      %2462 = vst [vmem:[%s445 + $0xc] sm:$0xf] %v2430
      %2463 = vst [vmem:[%s445 + $0x10] sm:$0xf] %v2431
      %2464 = vst [vmem:[%s445 + $0x14] sm:$0xf] %v2432
      %2465 = vst [vmem:[%s445 + $0x18] sm:$0xf] %v2433
      %2466 = vst [vmem:[%s445 + $0x1c] sm:$0xf] %v2434
      %2467 = vst [vmem:[%s445 + $0x20] sm:$0xf] %v2435
      %2468 = vst [vmem:[%s445 + $0x24] sm:$0xf] %v2436
      %2469 = vst [vmem:[%s445 + $0x28] sm:$0xf] %v2437
      %2470 = vst [vmem:[%s445 + $0x2c] sm:$0xf] %v2438
      %2471 = vst [vmem:[%s445 + $0x30] sm:$0xf] %v2439
      %2472 = vst [vmem:[%s445 + $0x34] sm:$0xf] %v2440
      %2473 = vst [vmem:[%s445 + $0x38] sm:$0xf] %v2441
      %2474 = vst [vmem:[%s445 + $0x3c] sm:$0xf] %v2442
      %s2475 = smul.u32 8, %s23
      %p2476 = scmp.lt.s32.totalorder %s22, 1
      %s2477 = scalar_select %p2476, %s22, 1
      %p2478 = scmp.lt.s32.totalorder %s2475, 15
      %s2479 = scalar_select %p2478, %s2475, 15
      %s2480 = smul.addr %s2479, 2
      %s2481 = smul.addr %s2477, 32
      %s2482 = sadd.s32 %s2480, %s2481
      %s2483 = smul.addr %s2482, 4
      %s2484 = scalar_lea.vmem %s7, %s2483
      // Predicated region
      $region65: #{_lambda_.2} parent=47 // pred_check
        %p2485 = pneg %p234
      $region66: #{_lambda_.2} parent=47 // pred_check_branch
        %2487 = sbr.rel (%p2485) target = $region68
      $region67: #{_lambda_.2} parent=47 // pred_region
        %s2488 = smul.u32 8, %s23
      $region68: #{_lambda_.2} parent=47 // pred_fallthru
        _
    $region48: #{_lambda_.2} parent=5 // pred_fallthru
      _
    %p2489 = scmp.le.s32.totalorder 2, %s13
    // Predicated region
    $region69: #{_lambda_.2} parent=5 // pred_check
      %p2490 = pneg %p2489
    $region70: #{_lambda_.2} parent=5 // pred_check_branch
      %2492 = sbr.rel (%p2490) target = $region72
    $region71: #{_lambda_.2} parent=5 // pred_region
      %s2493 = ssub.s32 %s13, 2
      // Predicated region
      $region73: #{_lambda_.2} parent=71 // pred_check
        %p2494 = pneg %p240
      $region74: #{_lambda_.2} parent=71 // pred_check_branch
        %2496 = sbr.rel (%p2494) target = $region76
      $region75: #{_lambda_.2} parent=71 // pred_region
        %s2497 = smul.u32 8, %s25
        %p2498 = scmp.lt.s32.totalorder %s24, 1
        %s2499 = scalar_select %p2498, %s24, 1
        %p2500 = scmp.lt.s32.totalorder %s2497, 15
        %s2501 = scalar_select %p2500, %s2497, 15
        %s2502 = smul.addr %s2501, 2
        %s2503 = smul.addr %s2499, 32
        %s2504 = sadd.s32 %s2502, %s2503
        %s2505 = smul.addr %s2504, 4
        %s2506 = scalar_lea.vmem %s7, %s2505
      $region76: #{_lambda_.2} parent=71 // pred_fallthru
        _
    $region72: #{_lambda_.2} parent=5 // pred_fallthru
      _
  $region6: #{_lambda_.2} parent=0 // loop_footer
    %s17 = sadd.s32 1, %s13
  $region7: #{_lambda_.2} parent=0 // loop_footer_branch
    %12 = sbr.rel target = $region3
  $region8: #{_lambda_.2} parent=0 // loop_exit
    _

</llo_original>
